<compile_context>
chip_gen: v7x
topology: tpu7x:2x2x1
jax: 0.10.0
libtpu: 0.0.40
codegen_flags: <defaults>
</compile_context>

<pallas_src>
import functools

import jax
import jax.numpy as jnp
from jax.experimental import pallas as pl
from jax.experimental.pallas import tpu as pltpu


# ----------------------------- Pallas kernel ----------------------------------

def attention_kernel(xq_ref,      # (1, tq, D)    query rows for this tile (f32)
                     ctx_ref,     # (1, Nk, D)    key/value context rows (f32)
                     wq_ref,      # (D, inner)    W_q with softmax scale folded in (bf16)
                     wk_ref,      # (D, inner)    W_k (bf16)
                     wv_ref,      # (D, inner)    W_v (bf16)
                     wo_ref,      # (inner, D)    W_out (bf16)
                     bo_ref,      # (1, D)        output bias (f32)
                     o_ref,       # (1, tq, D)    output block
                     *, heads, dim_head):
    xq = xq_ref[0].astype(jnp.bfloat16)       # (tq, D)
    ctx = ctx_ref[0].astype(jnp.bfloat16)     # (Nk, D)

    # Full-width projections (inner = heads*dim_head lanes), f32 accumulation.
    q = jnp.dot(xq, wq_ref[...], preferred_element_type=jnp.float32)    # (tq, inner)
    k = jnp.dot(ctx, wk_ref[...], preferred_element_type=jnp.float32)   # (Nk, inner)
    v = jnp.dot(ctx, wv_ref[...], preferred_element_type=jnp.float32)   # (Nk, inner)

    q = q.astype(jnp.bfloat16)
    k = k.astype(jnp.bfloat16)
    v = v.astype(jnp.bfloat16)

    # Per-head attention: static unroll over the (small) head count.
    head_ctx = []
    for h in range(heads):
        lo = h * dim_head
        qh = q[:, lo:lo + dim_head]                                     # (tq, Dh)
        kh = k[:, lo:lo + dim_head]                                     # (Nk, Dh)
        vh = v[:, lo:lo + dim_head]                                     # (Nk, Dh)

        # Scores: contract head dims directly (no explicit transpose copy).
        dots = jax.lax.dot_general(qh, kh, (((1,), (1,)), ((), ())),
                                   preferred_element_type=jnp.float32)  # (tq, Nk)
        dots = dots - jnp.max(dots, axis=-1, keepdims=True)
        e = jnp.exp(dots)
        denom = jnp.sum(e, axis=-1, keepdims=True)                      # (tq, 1)

        # Deferred normalization: divide the small (tq, Dh) tile, not the scores.
        pv = jnp.dot(e.astype(jnp.bfloat16), vh,
                     preferred_element_type=jnp.float32)                # (tq, Dh)
        head_ctx.append(pv * pl.reciprocal(denom, approx=True))

    # Concat heads along lanes, single full-width output projection + bias.
    out_inner = jnp.concatenate(head_ctx, axis=-1).astype(jnp.bfloat16)  # (tq, inner)
    out = jnp.dot(out_inner, wo_ref[...],
                  preferred_element_type=jnp.float32)                    # (tq, D)
    o_ref[0] = (out + bo_ref[...]).astype(o_ref.dtype)


# ----------------------------- parameter preparation ---------------------------

def prepare_params(params, *, heads, dim_head):
    """One-time layout/dtype prep: fold softmax scale into W_q, split W_kv, cast
    MXU weights to bf16.  Do NOT call this per forward pass."""
    wq, wkv, wo, bo = params
    D, inner = wq.shape
    assert inner == heads * dim_head
    scale = dim_head ** (-0.5)
    wq_p = (wq * scale).astype(jnp.bfloat16)        # (D, inner), scale folded in
    wk_p = wkv[:, :inner].astype(jnp.bfloat16)      # (D, inner)
    wv_p = wkv[:, inner:].astype(jnp.bfloat16)      # (D, inner)
    wo_p = wo.astype(jnp.bfloat16)                  # (inner, D)
    bo_p = bo.astype(jnp.float32)                   # (1, D)
    return wq_p, wk_p, wv_p, wo_p, bo_p


# ----------------------------- wrapper -----------------------------------------

def attention_forward(x, prepared, *, heads, dim_head,
                      context=None, kv_include_self=False):
    wq_p, wk_p, wv_p, wo_p, bo_p = prepared
    if context is None:
        context = x
    if kv_include_self:
        context = jnp.concatenate([x, context], axis=1)

    B, Nq, D = x.shape
    _, Nk, _ = context.shape
    inner = heads * dim_head

    # Query tiling: keep the whole (small) sequence per program; for longer
    # sequences use big tiles (pipeline-overhead amortization, see review).
    tq = Nq if Nq <= 512 else 256
    assert Nq % tq == 0, "query length must be divisible by the query tile"
    nq_tiles = Nq // tq

    kernel = functools.partial(attention_kernel, heads=heads, dim_head=dim_head)

    in_specs = [
        pl.BlockSpec((1, tq, D), lambda b, i: (b, i, 0)),      # x (queries)
        pl.BlockSpec((1, Nk, D), lambda b, i: (b, 0, 0)),      # context (keys/values)
        pl.BlockSpec((D, inner), lambda b, i: (0, 0)),         # W_q (scale folded, bf16)
        pl.BlockSpec((D, inner), lambda b, i: (0, 0)),         # W_k (bf16)
        pl.BlockSpec((D, inner), lambda b, i: (0, 0)),         # W_v (bf16)
        pl.BlockSpec((inner, D), lambda b, i: (0, 0)),         # W_out (bf16)
        pl.BlockSpec((1, D), lambda b, i: (0, 0)),             # b_out (f32)
    ]
    out_specs = pl.BlockSpec((1, tq, D), lambda b, i: (b, i, 0))

    return pl.pallas_call(
        kernel,
        out_shape=jax.ShapeDtypeStruct((B, Nq, D), x.dtype),
        grid=(B, nq_tiles),
        in_specs=in_specs,
        out_specs=out_specs,
        compiler_params=pltpu.CompilerParams(
            dimension_semantics=("parallel", "parallel")),
    )(x, context, wq_p, wk_p, wv_p, wo_p, bo_p)


# ----------------------------- pure-JAX reference ------------------------------

def attention_ref(x, params, *, heads, dim_head, context=None, kv_include_self=False):
    wq, wkv, wo, bo = params
    if context is None:
        context = x
    if kv_include_self:
        context = jnp.concatenate([x, context], axis=1)
    B, Nq, D = x.shape
    inner = heads * dim_head
    scale = dim_head ** (-0.5)

    q = x @ wq                           # (B, Nq, inner)
    kv = context @ wkv                   # (B, Nk, 2*inner)
    k, v = kv[..., :inner], kv[..., inner:]

    def split(t):
        return t.reshape(t.shape[0], t.shape[1], heads, dim_head).transpose(0, 2, 1, 3)

    qh, kh, vh = split(q), split(k), split(v)
    dots = jnp.einsum("bhid,bhjd->bhij", qh, kh) * scale
    attn = jax.nn.softmax(dots, axis=-1)
    out = jnp.einsum("bhij,bhjd->bhid", attn, vh)
    out = out.transpose(0, 2, 1, 3).reshape(B, Nq, inner)
    return out @ wo + bo


# ----------------------------- parameter init ----------------------------------

def init_params(key, *, dim, heads, dim_head):
    inner = heads * dim_head
    k1, k2, k3, k4 = jax.random.split(key, 4)
    wq = 0.05 * jax.random.normal(k1, (dim, inner), jnp.float32)       # to_q (no bias)
    wkv = 0.05 * jax.random.normal(k2, (dim, 2 * inner), jnp.float32)  # to_kv (no bias)
    wo = 0.05 * jax.random.normal(k3, (inner, dim), jnp.float32)       # to_out Linear W
    bo = 0.01 * jax.random.normal(k4, (1, dim), jnp.float32)           # to_out Linear b
    return wq, wkv, wo, bo


# ----------------------------- main ---------------------------------------------

if __name__ == "__main__":
    # Small but lane-friendly shapes: D and heads*dim_head are multiples of 128.
    B, N, dim, heads, dim_head = 2, 16, 128, 4, 32

    key = jax.random.PRNGKey(0)
    kx, kc, kp = jax.random.split(key, 3)
    x = jax.random.normal(kx, (B, N, dim), jnp.float32)
    params = init_params(kp, dim=dim, heads=heads, dim_head=dim_head)
    prepared = prepare_params(params, heads=heads, dim_head=dim_head)

    # bf16 MXU operands with f32 accumulation -> compare against the f32
    # reference at bf16-appropriate tolerances.
    ATOL = 3e-2
    RTOL = 3e-2

    # --- default forward: self-attention ---
    out = attention_forward(x, prepared, heads=heads, dim_head=dim_head)
    out = jax.block_until_ready(out)
    ref = attention_ref(x, params, heads=heads, dim_head=dim_head)
    if not jnp.allclose(out, ref, atol=ATOL, rtol=RTOL):
        err = jnp.max(jnp.abs(out - ref))
        raise AssertionError(
            f"Pallas self-attention output does not match reference (max abs err {err})")

    # --- cross-attention path with kv_include_self=True ---
    ctx = jax.random.normal(kc, (B, 24, dim), jnp.float32)
    out2 = attention_forward(x, prepared, heads=heads, dim_head=dim_head,
                             context=ctx, kv_include_self=True)
    out2 = jax.block_until_ready(out2)
    ref2 = attention_ref(x, params, heads=heads, dim_head=dim_head,
                         context=ctx, kv_include_self=True)
    if not jnp.allclose(out2, ref2, atol=ATOL, rtol=RTOL):
        err = jnp.max(jnp.abs(out2 - ref2))
        raise AssertionError(
            f"Pallas cross-attention output does not match reference (max abs err {err})")

    print("KERNEL_OK")
</pallas_src>

<mosaic_0001>
module attributes {stable_mosaic.version = 11 : i64} {
  func.func @attention_kernel(%arg0: i32, %arg1: i32, %arg2: memref<1x16x128xf32, #tpu.memory_space<vmem>>, %arg3: memref<1x16x128xf32, #tpu.memory_space<vmem>>, %arg4: memref<128x128xbf16, #tpu.memory_space<vmem>>, %arg5: memref<128x128xbf16, #tpu.memory_space<vmem>>, %arg6: memref<128x128xbf16, #tpu.memory_space<vmem>>, %arg7: memref<128x128xbf16, #tpu.memory_space<vmem>>, %arg8: memref<1x128xf32, #tpu.memory_space<vmem>>, %arg9: memref<1x16x128xf32, #tpu.memory_space<vmem>>) attributes {dimension_semantics = [#tpu.dimension_semantics<parallel>, #tpu.dimension_semantics<parallel>], iteration_bounds = array<i64: 2, 1>, scalar_prefetch = 0 : i64, scratch_operands = 0 : i64, tpu.core_type = #tpu.core_type<tc>, window_params = [{transform_indices = @transform_0, window_bounds = array<i64: 1, 16, 128>}, {transform_indices = @transform_1, window_bounds = array<i64: 1, 16, 128>}, {pipeline_mode = #tpu.pipeline_mode<synchronous>, transform_indices = @transform_2, window_bounds = array<i64: 128, 128>}, {pipeline_mode = #tpu.pipeline_mode<synchronous>, transform_indices = @transform_3, window_bounds = array<i64: 128, 128>}, {pipeline_mode = #tpu.pipeline_mode<synchronous>, transform_indices = @transform_4, window_bounds = array<i64: 128, 128>}, {pipeline_mode = #tpu.pipeline_mode<synchronous>, transform_indices = @transform_5, window_bounds = array<i64: 128, 128>}, {pipeline_mode = #tpu.pipeline_mode<synchronous>, transform_indices = @transform_6, window_bounds = array<i64: 1, 128>}, {transform_indices = @transform_7, window_bounds = array<i64: 1, 16, 128>}]} {
    %c0 = arith.constant 0 : index
    %c0_0 = arith.constant 0 : index
    %c0_1 = arith.constant 0 : index
    %0 = vector.load %arg2[%c0, %c0_0, %c0_1] : memref<1x16x128xf32, #tpu.memory_space<vmem>>, vector<1x16x128xf32>
    %1 = vector.shape_cast %0 : vector<1x16x128xf32> to vector<16x128xf32>
    %2 = arith.truncf %1 : vector<16x128xf32> to vector<16x128xbf16>
    %c0_2 = arith.constant 0 : index
    %c0_3 = arith.constant 0 : index
    %c0_4 = arith.constant 0 : index
    %3 = vector.load %arg3[%c0_2, %c0_3, %c0_4] : memref<1x16x128xf32, #tpu.memory_space<vmem>>, vector<1x16x128xf32>
    %4 = vector.shape_cast %3 : vector<1x16x128xf32> to vector<16x128xf32>
    %5 = arith.truncf %4 : vector<16x128xf32> to vector<16x128xbf16>
    %c0_5 = arith.constant 0 : index
    %c0_6 = arith.constant 0 : index
    %6 = vector.load %arg4[%c0_5, %c0_6] : memref<128x128xbf16, #tpu.memory_space<vmem>>, vector<128x128xbf16>
    %cst = arith.constant dense<0.000000e+00> : vector<16x128xf32>
    %7 = tpu.matmul %2, %6, %cst {dimension_numbers = #tpu.dot_dimension_numbers<[1], [0], [0], [1], [0, 0, 1, 1], [], []>} : vector<16x128xbf16>, vector<128x128xbf16>, vector<16x128xf32> -> vector<16x128xf32>
    %c0_7 = arith.constant 0 : index
    %c0_8 = arith.constant 0 : index
    %8 = vector.load %arg5[%c0_7, %c0_8] : memref<128x128xbf16, #tpu.memory_space<vmem>>, vector<128x128xbf16>
    %cst_9 = arith.constant dense<0.000000e+00> : vector<16x128xf32>
    %9 = tpu.matmul %5, %8, %cst_9 {dimension_numbers = #tpu.dot_dimension_numbers<[1], [0], [0], [1], [0, 0, 1, 1], [], []>} : vector<16x128xbf16>, vector<128x128xbf16>, vector<16x128xf32> -> vector<16x128xf32>
    %c0_10 = arith.constant 0 : index
    %c0_11 = arith.constant 0 : index
    %10 = vector.load %arg6[%c0_10, %c0_11] : memref<128x128xbf16, #tpu.memory_space<vmem>>, vector<128x128xbf16>
    %cst_12 = arith.constant dense<0.000000e+00> : vector<16x128xf32>
    %11 = tpu.matmul %5, %10, %cst_12 {dimension_numbers = #tpu.dot_dimension_numbers<[1], [0], [0], [1], [0, 0, 1, 1], [], []>} : vector<16x128xbf16>, vector<128x128xbf16>, vector<16x128xf32> -> vector<16x128xf32>
    %12 = arith.truncf %7 : vector<16x128xf32> to vector<16x128xbf16>
    %13 = arith.truncf %9 : vector<16x128xf32> to vector<16x128xbf16>
    %14 = arith.truncf %11 : vector<16x128xf32> to vector<16x128xbf16>
    %15 = vector.extract_strided_slice %12 {offsets = [0, 0], sizes = [16, 32], strides = [1, 1]} : vector<16x128xbf16> to vector<16x32xbf16>
    %16 = vector.extract_strided_slice %13 {offsets = [0, 0], sizes = [16, 32], strides = [1, 1]} : vector<16x128xbf16> to vector<16x32xbf16>
    %17 = vector.extract_strided_slice %14 {offsets = [0, 0], sizes = [16, 32], strides = [1, 1]} : vector<16x128xbf16> to vector<16x32xbf16>
    %cst_13 = arith.constant dense<0.000000e+00> : vector<16x16xf32>
    %18 = tpu.matmul %15, %16, %cst_13 {dimension_numbers = #tpu.dot_dimension_numbers<[1], [1], [0], [0], [0, 0, 1, 0], [], []>} : vector<16x32xbf16>, vector<16x32xbf16>, vector<16x16xf32> -> vector<16x16xf32>
    %cst_14 = arith.constant dense<0xFF800000> : vector<16xf32>
    %19 = vector.multi_reduction <maximumf>, %18, %cst_14 [1] : vector<16x16xf32> to vector<16xf32>
    %20 = vector.shape_cast %19 : vector<16xf32> to vector<16x1xf32>
    %21 = vector.broadcast %20 : vector<16x1xf32> to vector<16x16xf32>
    %22 = arith.subf %18, %21 : vector<16x16xf32>
    %23 = math.exp %22 : vector<16x16xf32>
    %cst_15 = arith.constant dense<0.000000e+00> : vector<16xf32>
    %24 = vector.multi_reduction <add>, %23, %cst_15 [1] : vector<16x16xf32> to vector<16xf32>
    %25 = vector.shape_cast %24 : vector<16xf32> to vector<16x1xf32>
    %26 = arith.truncf %23 : vector<16x16xf32> to vector<16x16xbf16>
    %cst_16 = arith.constant dense<0.000000e+00> : vector<16x32xf32>
    %27 = tpu.matmul %26, %17, %cst_16 {dimension_numbers = #tpu.dot_dimension_numbers<[1], [0], [0], [1], [0, 0, 1, 1], [], []>} : vector<16x16xbf16>, vector<16x32xbf16>, vector<16x32xf32> -> vector<16x32xf32>
    %28 = tpu.reciprocal %25 {approx = true} : vector<16x1xf32> -> vector<16x1xf32>
    %29 = vector.broadcast %28 : vector<16x1xf32> to vector<16x32xf32>
    %30 = arith.mulf %27, %29 : vector<16x32xf32>
    %31 = vector.extract_strided_slice %12 {offsets = [0, 32], sizes = [16, 32], strides = [1, 1]} : vector<16x128xbf16> to vector<16x32xbf16>
    %32 = vector.extract_strided_slice %13 {offsets = [0, 32], sizes = [16, 32], strides = [1, 1]} : vector<16x128xbf16> to vector<16x32xbf16>
    %33 = vector.extract_strided_slice %14 {offsets = [0, 32], sizes = [16, 32], strides = [1, 1]} : vector<16x128xbf16> to vector<16x32xbf16>
    %cst_17 = arith.constant dense<0.000000e+00> : vector<16x16xf32>
    %34 = tpu.matmul %31, %32, %cst_17 {dimension_numbers = #tpu.dot_dimension_numbers<[1], [1], [0], [0], [0, 0, 1, 0], [], []>} : vector<16x32xbf16>, vector<16x32xbf16>, vector<16x16xf32> -> vector<16x16xf32>
    %cst_18 = arith.constant dense<0xFF800000> : vector<16xf32>
    %35 = vector.multi_reduction <maximumf>, %34, %cst_18 [1] : vector<16x16xf32> to vector<16xf32>
    %36 = vector.shape_cast %35 : vector<16xf32> to vector<16x1xf32>
    %37 = vector.broadcast %36 : vector<16x1xf32> to vector<16x16xf32>
    %38 = arith.subf %34, %37 : vector<16x16xf32>
    %39 = math.exp %38 : vector<16x16xf32>
    %cst_19 = arith.constant dense<0.000000e+00> : vector<16xf32>
    %40 = vector.multi_reduction <add>, %39, %cst_19 [1] : vector<16x16xf32> to vector<16xf32>
    %41 = vector.shape_cast %40 : vector<16xf32> to vector<16x1xf32>
    %42 = arith.truncf %39 : vector<16x16xf32> to vector<16x16xbf16>
    %cst_20 = arith.constant dense<0.000000e+00> : vector<16x32xf32>
    %43 = tpu.matmul %42, %33, %cst_20 {dimension_numbers = #tpu.dot_dimension_numbers<[1], [0], [0], [1], [0, 0, 1, 1], [], []>} : vector<16x16xbf16>, vector<16x32xbf16>, vector<16x32xf32> -> vector<16x32xf32>
    %44 = tpu.reciprocal %41 {approx = true} : vector<16x1xf32> -> vector<16x1xf32>
    %45 = vector.broadcast %44 : vector<16x1xf32> to vector<16x32xf32>
    %46 = arith.mulf %43, %45 : vector<16x32xf32>
    %47 = vector.extract_strided_slice %12 {offsets = [0, 64], sizes = [16, 32], strides = [1, 1]} : vector<16x128xbf16> to vector<16x32xbf16>
    %48 = vector.extract_strided_slice %13 {offsets = [0, 64], sizes = [16, 32], strides = [1, 1]} : vector<16x128xbf16> to vector<16x32xbf16>
    %49 = vector.extract_strided_slice %14 {offsets = [0, 64], sizes = [16, 32], strides = [1, 1]} : vector<16x128xbf16> to vector<16x32xbf16>
    %cst_21 = arith.constant dense<0.000000e+00> : vector<16x16xf32>
    %50 = tpu.matmul %47, %48, %cst_21 {dimension_numbers = #tpu.dot_dimension_numbers<[1], [1], [0], [0], [0, 0, 1, 0], [], []>} : vector<16x32xbf16>, vector<16x32xbf16>, vector<16x16xf32> -> vector<16x16xf32>
    %cst_22 = arith.constant dense<0xFF800000> : vector<16xf32>
    %51 = vector.multi_reduction <maximumf>, %50, %cst_22 [1] : vector<16x16xf32> to vector<16xf32>
    %52 = vector.shape_cast %51 : vector<16xf32> to vector<16x1xf32>
    %53 = vector.broadcast %52 : vector<16x1xf32> to vector<16x16xf32>
    %54 = arith.subf %50, %53 : vector<16x16xf32>
    %55 = math.exp %54 : vector<16x16xf32>
    %cst_23 = arith.constant dense<0.000000e+00> : vector<16xf32>
    %56 = vector.multi_reduction <add>, %55, %cst_23 [1] : vector<16x16xf32> to vector<16xf32>
    %57 = vector.shape_cast %56 : vector<16xf32> to vector<16x1xf32>
    %58 = arith.truncf %55 : vector<16x16xf32> to vector<16x16xbf16>
    %cst_24 = arith.constant dense<0.000000e+00> : vector<16x32xf32>
    %59 = tpu.matmul %58, %49, %cst_24 {dimension_numbers = #tpu.dot_dimension_numbers<[1], [0], [0], [1], [0, 0, 1, 1], [], []>} : vector<16x16xbf16>, vector<16x32xbf16>, vector<16x32xf32> -> vector<16x32xf32>
    %60 = tpu.reciprocal %57 {approx = true} : vector<16x1xf32> -> vector<16x1xf32>
    %61 = vector.broadcast %60 : vector<16x1xf32> to vector<16x32xf32>
    %62 = arith.mulf %59, %61 : vector<16x32xf32>
    %63 = vector.extract_strided_slice %12 {offsets = [0, 96], sizes = [16, 32], strides = [1, 1]} : vector<16x128xbf16> to vector<16x32xbf16>
    %64 = vector.extract_strided_slice %13 {offsets = [0, 96], sizes = [16, 32], strides = [1, 1]} : vector<16x128xbf16> to vector<16x32xbf16>
    %65 = vector.extract_strided_slice %14 {offsets = [0, 96], sizes = [16, 32], strides = [1, 1]} : vector<16x128xbf16> to vector<16x32xbf16>
    %cst_25 = arith.constant dense<0.000000e+00> : vector<16x16xf32>
    %66 = tpu.matmul %63, %64, %cst_25 {dimension_numbers = #tpu.dot_dimension_numbers<[1], [1], [0], [0], [0, 0, 1, 0], [], []>} : vector<16x32xbf16>, vector<16x32xbf16>, vector<16x16xf32> -> vector<16x16xf32>
    %cst_26 = arith.constant dense<0xFF800000> : vector<16xf32>
    %67 = vector.multi_reduction <maximumf>, %66, %cst_26 [1] : vector<16x16xf32> to vector<16xf32>
    %68 = vector.shape_cast %67 : vector<16xf32> to vector<16x1xf32>
    %69 = vector.broadcast %68 : vector<16x1xf32> to vector<16x16xf32>
    %70 = arith.subf %66, %69 : vector<16x16xf32>
    %71 = math.exp %70 : vector<16x16xf32>
    %cst_27 = arith.constant dense<0.000000e+00> : vector<16xf32>
    %72 = vector.multi_reduction <add>, %71, %cst_27 [1] : vector<16x16xf32> to vector<16xf32>
    %73 = vector.shape_cast %72 : vector<16xf32> to vector<16x1xf32>
    %74 = arith.truncf %71 : vector<16x16xf32> to vector<16x16xbf16>
    %cst_28 = arith.constant dense<0.000000e+00> : vector<16x32xf32>
    %75 = tpu.matmul %74, %65, %cst_28 {dimension_numbers = #tpu.dot_dimension_numbers<[1], [0], [0], [1], [0, 0, 1, 1], [], []>} : vector<16x16xbf16>, vector<16x32xbf16>, vector<16x32xf32> -> vector<16x32xf32>
    %76 = tpu.reciprocal %73 {approx = true} : vector<16x1xf32> -> vector<16x1xf32>
    %77 = vector.broadcast %76 : vector<16x1xf32> to vector<16x32xf32>
    %78 = arith.mulf %75, %77 : vector<16x32xf32>
    %79 = tpu.concatenate %30, %46, %62, %78 in 1 : vector<16x32xf32>, vector<16x32xf32>, vector<16x32xf32>, vector<16x32xf32> -> vector<16x128xf32>
    %80 = arith.truncf %79 : vector<16x128xf32> to vector<16x128xbf16>
    %c0_29 = arith.constant 0 : index
    %c0_30 = arith.constant 0 : index
    %81 = vector.load %arg7[%c0_29, %c0_30] : memref<128x128xbf16, #tpu.memory_space<vmem>>, vector<128x128xbf16>
    %cst_31 = arith.constant dense<0.000000e+00> : vector<16x128xf32>
    %82 = tpu.matmul %80, %81, %cst_31 {dimension_numbers = #tpu.dot_dimension_numbers<[1], [0], [0], [1], [0, 0, 1, 1], [], []>} : vector<16x128xbf16>, vector<128x128xbf16>, vector<16x128xf32> -> vector<16x128xf32>
    %c0_32 = arith.constant 0 : index
    %c0_33 = arith.constant 0 : index
    %83 = vector.load %arg8[%c0_32, %c0_33] : memref<1x128xf32, #tpu.memory_space<vmem>>, vector<1x128xf32>
    %84 = vector.broadcast %83 : vector<1x128xf32> to vector<16x128xf32>
    %85 = arith.addf %82, %84 : vector<16x128xf32>
    %c0_34 = arith.constant 0 : index
    %c0_35 = arith.constant 0 : index
    %c0_36 = arith.constant 0 : index
    %86 = vector.load %arg9[%c0_34, %c0_35, %c0_36] : memref<1x16x128xf32, #tpu.memory_space<vmem>>, vector<1x16x128xf32>
    %87 = vector.shape_cast %86 : vector<1x16x128xf32> to vector<16x128xf32>
    %88 = vector.shape_cast %85 : vector<16x128xf32> to vector<1x16x128xf32>
    tpu.vector_store %arg9[%c0_34, %c0_35, %c0_36], %88 {strides = array<i32>} : memref<1x16x128xf32, #tpu.memory_space<vmem>>, vector<1x16x128xf32>,
    return
  }
  func.func @transform_0(%arg0: i32, %arg1: i32) -> (i32, i32, i32) {
    %c0_i32 = arith.constant 0 : i32
    %c0_i32_0 = arith.constant 0 : i32
    return %arg0, %arg1, %c0_i32 : i32, i32, i32
  }
  func.func @transform_1(%arg0: i32, %arg1: i32) -> (i32, i32, i32) {
    %c0_i32 = arith.constant 0 : i32
    %c0_i32_0 = arith.constant 0 : i32
    %c0_i32_1 = arith.constant 0 : i32
    return %arg0, %c0_i32, %c0_i32_0 : i32, i32, i32
  }
  func.func @transform_2(%arg0: i32, %arg1: i32) -> (i32, i32) {
    %c0_i32 = arith.constant 0 : i32
    %c0_i32_0 = arith.constant 0 : i32
    %c0_i32_1 = arith.constant 0 : i32
    return %c0_i32, %c0_i32_0 : i32, i32
  }
  func.func @transform_3(%arg0: i32, %arg1: i32) -> (i32, i32) {
    %c0_i32 = arith.constant 0 : i32
    %c0_i32_0 = arith.constant 0 : i32
    %c0_i32_1 = arith.constant 0 : i32
    return %c0_i32, %c0_i32_0 : i32, i32
  }
  func.func @transform_4(%arg0: i32, %arg1: i32) -> (i32, i32) {
    %c0_i32 = arith.constant 0 : i32
    %c0_i32_0 = arith.constant 0 : i32
    %c0_i32_1 = arith.constant 0 : i32
    return %c0_i32, %c0_i32_0 : i32, i32
  }
  func.func @transform_5(%arg0: i32, %arg1: i32) -> (i32, i32) {
    %c0_i32 = arith.constant 0 : i32
    %c0_i32_0 = arith.constant 0 : i32
    %c0_i32_1 = arith.constant 0 : i32
    return %c0_i32, %c0_i32_0 : i32, i32
  }
  func.func @transform_6(%arg0: i32, %arg1: i32) -> (i32, i32) {
    %c0_i32 = arith.constant 0 : i32
    %c0_i32_0 = arith.constant 0 : i32
    %c0_i32_1 = arith.constant 0 : i32
    return %c0_i32, %c0_i32_0 : i32, i32
  }
  func.func @transform_7(%arg0: i32, %arg1: i32) -> (i32, i32, i32) {
    %c0_i32 = arith.constant 0 : i32
    %c0_i32_0 = arith.constant 0 : i32
    return %arg0, %arg1, %c0_i32 : i32, i32, i32
  }
}

</mosaic_0001>

<llo_original>
// kernel: tpu_custom_call.1
$region0: #{tpu_custom_call.1}
  #allocation0 [shape = 'u32[]', space=smem, size = 0x4, offset = 0x4, fixed_abs, tag = 'smem constant byte address 0x4 - core index']
  #allocation1 [shape = 'u32[144,128]{1,0:T(1,128)}', space=vmem, size = 0x12000, scoped, tag = 'internal scratch']
  %s0 = inlined_call_operand.hbm [shape: f32[2,16,128], index: 0, kind: input, shape index: {}]
  %s1 = inlined_call_operand.hbm [shape: f32[2,16,128], index: 1, kind: input, shape index: {}]
  %s2 = inlined_call_operand.hbm [shape: bf16[128,128], index: 2, kind: input, shape index: {}]
  %s3 = inlined_call_operand.hbm [shape: bf16[128,128], index: 3, kind: input, shape index: {}]
  %s4 = inlined_call_operand.hbm [shape: bf16[128,128], index: 4, kind: input, shape index: {}]
  %s5 = inlined_call_operand.hbm [shape: bf16[128,128], index: 5, kind: input, shape index: {}]
  %s6 = inlined_call_operand.vmem [shape: f32[1,128], index: 6, kind: input, shape index: {}]
  %s7 = inlined_call_operand.hbm [shape: f32[2,16,128], index: 7, kind: output, shape index: {}]
  %s8 = sld [smem:[#allocation0]]
  $region85: #{tpu_custom_call.1} parent=0
    _
  %s10 = ssub.s32 1, %s8
  %s11 = scalar_select 0, %s10, %s8
  $region1: #{tpu_custom_call.1} parent=0
    #allocation2 [shape = 'u8[16384]{0}', space=vmem, size = 0x4000, scoped, tag = 'input window, operand 0']
    #allocation3 [shape = 's32[2]{0}', space=sflag, size = 0x8, scoped, tag = 'scoped memory for tpu_custom_call.1']
    #allocation4 [shape = 's32[2]{0}', space=sflag, size = 0x8, scoped, tag = 'scoped memory for tpu_custom_call.1']
    #allocation5 [shape = 'u8[16384]{0}', space=vmem, size = 0x4000, scoped, tag = 'input window, operand 1']
    #allocation6 [shape = 's32[2]{0}', space=sflag, size = 0x8, scoped, tag = 'scoped memory for tpu_custom_call.1']
    #allocation7 [shape = 'u8[32768]{0}', space=vmem, size = 0x8000, scoped, tag = 'input window, operand 2, single buffered']
    #allocation8 [shape = 'u8[32768]{0}', space=vmem, size = 0x8000, scoped, tag = 'input window, operand 3, single buffered']
    #allocation9 [shape = 's32[1]{0}', space=sflag, size = 0x4, scoped, tag = 'scoped memory for tpu_custom_call.1']
    #allocation10 [shape = 'u8[32768]{0}', space=vmem, size = 0x8000, scoped, tag = 'input window, operand 4, single buffered']
    #allocation11 [shape = 'u8[32768]{0}', space=vmem, size = 0x8000, scoped, tag = 'input window, operand 5, single buffered']
    #allocation12 [shape = 's32[1]{0}', space=sflag, size = 0x4, scoped, tag = 'scoped memory for tpu_custom_call.1']
    #allocation13 [shape = 'u8[16384]{0}', space=vmem, size = 0x4000, scoped, tag = 'output window, operand 0']
    %12 = vsyncpa [#allocation3], 0
    %s13 = scalar_lea.sflag [#allocation3], 1
    %14 = vsyncpa %s13, 0
    %15 = vsyncpa [#allocation6], 0
    %s16 = scalar_lea.sflag [#allocation6], 1
    %17 = vsyncpa %s16, 0
    %18 = vsyncpa [#allocation9], 0
    %19 = vsyncpa [#allocation12], 0
    %20 = vsyncpa [#allocation4], 0
    %s21 = scalar_lea.sflag [#allocation4], 1
    %22 = vsyncpa %s21, 0
    loop: start=0, step=1, limit=4
    $region2: #{tpu_custom_call.1} parent=1 // loop_pre_header
      _
    $region3: #{tpu_custom_call.1} parent=1 // loop_header
      %s24 = sphi 0, %s28
      %p25 = scmp.ge.s32.totalorder %s24, 4
      %s31 = sphi 0, %s43
      %s32 = sphi 0, %s39
      %s33 = sphi 0, %s31
      %s34 = sphi 0, %s32
      %s35 = sphi 0, %s33
      %s36 = sphi 0, %s34
      %s48 = sphi 0, %s50
      %s51 = sphi 0, %s48
      %s52 = sphi 0, %s51
      %s68 = sphi 0, %s52
      %s74 = sphi 0, %s76
      %s77 = sphi 0, %s74
      %s78 = sphi 0, %s77
      %s94 = sphi 0, %s78
      %s98 = sphi 0, %s98
      %s100 = sphi 0, %s98
      %s101 = sphi 0, %s100
      %s115 = sphi 0, %s101
      %s119 = sphi 0, %s119
      %s121 = sphi 0, %s119
      %s122 = sphi 0, %s121
      %s136 = sphi 0, %s122
      %s140 = sphi 0, %s140
      %s142 = sphi 0, %s140
      %s143 = sphi 0, %s142
      %s157 = sphi 0, %s143
      %s161 = sphi 0, %s161
      %s163 = sphi 0, %s161
      %s164 = sphi 0, %s163
      %s178 = sphi 0, %s164
      %s182 = sphi 0, %s182
      %s184 = sphi 0, %s182
      %s185 = sphi 0, %s184
      %s199 = sphi 0, %s185
      %s207 = sphi 0, %s209
      %s210 = sphi 0, %s207
      %s211 = sphi 0, %s210
      %s227 = sphi 0, %s211
    $region4: #{tpu_custom_call.1} parent=1 // loop_header_branch
      %27 = sbr.rel (%p25) target = $region8
    $region5: #{tpu_custom_call.1} parent=1 // loop_body
      %s29 = ssub.s32 %s24, 1
      %s30 = ssub.s32 %s24, 2
      %s37 = sadd.s32 1, %s32
      %p38 = scmp.ge.s32.totalorder %s37, 1
      %s39 = scalar_select %p38, 0, %s37
      %s40 = sadd.s32 1, %s31
      %s41 = scalar_select %p38, %s40, %s31
      %p42 = scmp.ge.s32.totalorder %s41, 2
      %s43 = scalar_select %p42, 0, %s41
      %s44 = ssub.s32 %s31, %s43
      %s45 = ssub.s32 %s32, %s39
      %s46 = sor.u32 %s44, %s45
      %p47 = scmp.eq.s32.totalorder %s46, 0
      %s49 = sadd.s32 %s48, 1
      %s50 = scalar_select %p47, %s48, %s49
      %p53 = pneg %p47
      %p54 = scmp.eq.s32.totalorder %s24, 1
      %p55 = por %p53, %p54
      %p56 = scmp.ne.s32.totalorder %s48, %s51
      %p57 = scmp.eq.s32.totalorder %s24, 0
      %p58 = por %p56, %p57
      %p59 = scmp.ne.s32.totalorder %s48, %s51
      %p60 = scmp.eq.s32.totalorder %s29, 1
      %p61 = por %p59, %p60
      %p62 = scmp.ne.s32.totalorder %s51, %s52
      %p63 = scmp.eq.s32.totalorder %s29, 0
      %p64 = por %p62, %p63
      %p65 = scmp.ne.s32.totalorder %s51, %s52
      %p66 = scmp.eq.s32.totalorder %s30, 1
      %p67 = por %p65, %p66
      %p69 = scmp.ne.s32.totalorder %s52, %s68
      %p70 = scmp.eq.s32.totalorder %s30, 0
      %p71 = por %p69, %p70
      %s72 = ssub.s32 %s31, %s43
      %p73 = scmp.eq.s32.totalorder %s72, 0
      %s75 = sadd.s32 %s74, 1
      %s76 = scalar_select %p73, %s74, %s75
      %p79 = pneg %p73
      %p80 = scmp.eq.s32.totalorder %s24, 1
      %p81 = por %p79, %p80
      %p82 = scmp.ne.s32.totalorder %s74, %s77
      %p83 = scmp.eq.s32.totalorder %s24, 0
      %p84 = por %p82, %p83
      %p85 = scmp.ne.s32.totalorder %s74, %s77
      %p86 = scmp.eq.s32.totalorder %s29, 1
      %p87 = por %p85, %p86
      %p88 = scmp.ne.s32.totalorder %s77, %s78
      %p89 = scmp.eq.s32.totalorder %s29, 0
      %p90 = por %p88, %p89
      %p91 = scmp.ne.s32.totalorder %s77, %s78
      %p92 = scmp.eq.s32.totalorder %s30, 1
      %p93 = por %p91, %p92
      %p95 = scmp.ne.s32.totalorder %s78, %s94
      %p96 = scmp.eq.s32.totalorder %s30, 0
      %p97 = por %p95, %p96
      %s99 = sadd.s32 %s98, 1
      %p102 = scmp.eq.s32.totalorder %s24, 1
      %p103 = scmp.ne.s32.totalorder %s98, %s100
      %p104 = scmp.eq.s32.totalorder %s24, 0
      %p105 = por %p103, %p104
      %p106 = scmp.ne.s32.totalorder %s98, %s100
      %p107 = scmp.eq.s32.totalorder %s29, 1
      %p108 = por %p106, %p107
      %p109 = scmp.ne.s32.totalorder %s100, %s101
      %p110 = scmp.eq.s32.totalorder %s29, 0
      %p111 = por %p109, %p110
      %p112 = scmp.ne.s32.totalorder %s100, %s101
      %p113 = scmp.eq.s32.totalorder %s30, 1
      %p114 = por %p112, %p113
      %p116 = scmp.ne.s32.totalorder %s101, %s115
      %p117 = scmp.eq.s32.totalorder %s30, 0
      %p118 = por %p116, %p117
      %s120 = sadd.s32 %s119, 1
      %p123 = scmp.eq.s32.totalorder %s24, 1
      %p124 = scmp.ne.s32.totalorder %s119, %s121
      %p125 = scmp.eq.s32.totalorder %s24, 0
      %p126 = por %p124, %p125
      %p127 = scmp.ne.s32.totalorder %s119, %s121
      %p128 = scmp.eq.s32.totalorder %s29, 1
      %p129 = por %p127, %p128
      %p130 = scmp.ne.s32.totalorder %s121, %s122
      %p131 = scmp.eq.s32.totalorder %s29, 0
      %p132 = por %p130, %p131
      %p133 = scmp.ne.s32.totalorder %s121, %s122
      %p134 = scmp.eq.s32.totalorder %s30, 1
      %p135 = por %p133, %p134
      %p137 = scmp.ne.s32.totalorder %s122, %s136
      %p138 = scmp.eq.s32.totalorder %s30, 0
      %p139 = por %p137, %p138
      %s141 = sadd.s32 %s140, 1
      %p144 = scmp.eq.s32.totalorder %s24, 1
      %p145 = scmp.ne.s32.totalorder %s140, %s142
      %p146 = scmp.eq.s32.totalorder %s24, 0
      %p147 = por %p145, %p146
      %p148 = scmp.ne.s32.totalorder %s140, %s142
      %p149 = scmp.eq.s32.totalorder %s29, 1
      %p150 = por %p148, %p149
      %p151 = scmp.ne.s32.totalorder %s142, %s143
      %p152 = scmp.eq.s32.totalorder %s29, 0
      %p153 = por %p151, %p152
      %p154 = scmp.ne.s32.totalorder %s142, %s143
      %p155 = scmp.eq.s32.totalorder %s30, 1
      %p156 = por %p154, %p155
      %p158 = scmp.ne.s32.totalorder %s143, %s157
      %p159 = scmp.eq.s32.totalorder %s30, 0
      %p160 = por %p158, %p159
      %s162 = sadd.s32 %s161, 1
      %p165 = scmp.eq.s32.totalorder %s24, 1
      %p166 = scmp.ne.s32.totalorder %s161, %s163
      %p167 = scmp.eq.s32.totalorder %s24, 0
      %p168 = por %p166, %p167
      %p169 = scmp.ne.s32.totalorder %s161, %s163
      %p170 = scmp.eq.s32.totalorder %s29, 1
      %p171 = por %p169, %p170
      %p172 = scmp.ne.s32.totalorder %s163, %s164
      %p173 = scmp.eq.s32.totalorder %s29, 0
      %p174 = por %p172, %p173
      %p175 = scmp.ne.s32.totalorder %s163, %s164
      %p176 = scmp.eq.s32.totalorder %s30, 1
      %p177 = por %p175, %p176
      %p179 = scmp.ne.s32.totalorder %s164, %s178
      %p180 = scmp.eq.s32.totalorder %s30, 0
      %p181 = por %p179, %p180
      %s183 = sadd.s32 %s182, 1
      %p186 = scmp.eq.s32.totalorder %s24, 1
      %p187 = scmp.ne.s32.totalorder %s182, %s184
      %p188 = scmp.eq.s32.totalorder %s24, 0
      %p189 = por %p187, %p188
      %p190 = scmp.ne.s32.totalorder %s182, %s184
      %p191 = scmp.eq.s32.totalorder %s29, 1
      %p192 = por %p190, %p191
      %p193 = scmp.ne.s32.totalorder %s184, %s185
      %p194 = scmp.eq.s32.totalorder %s29, 0
      %p195 = por %p193, %p194
      %p196 = scmp.ne.s32.totalorder %s184, %s185
      %p197 = scmp.eq.s32.totalorder %s30, 1
      %p198 = por %p196, %p197
      %p200 = scmp.ne.s32.totalorder %s185, %s199
      %p201 = scmp.eq.s32.totalorder %s30, 0
      %p202 = por %p200, %p201
      %s203 = ssub.s32 %s31, %s43
      %s204 = ssub.s32 %s32, %s39
      %s205 = sor.u32 %s203, %s204
      %p206 = scmp.eq.s32.totalorder %s205, 0
      %s208 = sadd.s32 %s207, 1
      %s209 = scalar_select %p206, %s207, %s208
      %p212 = pneg %p206
      %p213 = scmp.eq.s32.totalorder %s24, 1
      %p214 = por %p212, %p213
      %p215 = scmp.ne.s32.totalorder %s207, %s210
      %p216 = scmp.eq.s32.totalorder %s24, 0
      %p217 = por %p215, %p216
      %p218 = scmp.ne.s32.totalorder %s207, %s210
      %p219 = scmp.eq.s32.totalorder %s29, 1
      %p220 = por %p218, %p219
      %p221 = scmp.ne.s32.totalorder %s210, %s211
      %p222 = scmp.eq.s32.totalorder %s29, 0
      %p223 = por %p221, %p222
      %p224 = scmp.ne.s32.totalorder %s210, %s211
      %p225 = scmp.eq.s32.totalorder %s30, 1
      %p226 = por %p224, %p225
      %p228 = scmp.ne.s32.totalorder %s211, %s227
      %p229 = scmp.eq.s32.totalorder %s30, 0
      %p230 = por %p228, %p229
      %p231 = scmp.le.s32.totalorder 1, %s24
      %p232 = scmp.lt.s32.totalorder %s24, 3
      %p233 = pnand %p231, %p232
      %p234 = pneg %p233
      // Predicated region
      $region9: #{tpu_custom_call.1} parent=5 // pred_check
        _
      $region10: #{tpu_custom_call.1} parent=5 // pred_check_branch
        %236 = sbr.rel (%p233) target = $region12
      $region11: #{tpu_custom_call.1} parent=5 // pred_region
        %s237 = ssub.s32 %s24, 1
        // Predicated region
        $region13: #{tpu_custom_call.1} parent=11 // pred_check
          %p238 = pneg %p111
        $region14: #{tpu_custom_call.1} parent=11 // pred_check_branch
          %240 = sbr.rel (%p238) target = $region16
        $region15: #{tpu_custom_call.1} parent=11 // pred_region
          %s242 = ssub.s32 1024, 1024
          %243 = vsyncadd [#allocation6], %s242
          %s244 = sshll.u32 [#allocation7], 4
          %s245 = int_to_ptr.vmem [resolvable:$true] %s244
          %250 = dma.hbm_to_vmem [thread:$0]  %s2, 1024, %s245, [#allocation6], 64, 64, 4
        $region16: #{tpu_custom_call.1} parent=11 // pred_fallthru
          _
        // Predicated region
        $region17: #{tpu_custom_call.1} parent=11 // pred_check
          %p251 = pneg %p132
        $region18: #{tpu_custom_call.1} parent=11 // pred_check_branch
          %253 = sbr.rel (%p251) target = $region20
        $region19: #{tpu_custom_call.1} parent=11 // pred_region
          %s255 = ssub.s32 1024, 1024
          %256 = vsyncadd [#allocation9], %s255
          %s257 = sshll.u32 [#allocation8], 4
          %s258 = int_to_ptr.vmem [resolvable:$true] %s257
          %263 = dma.hbm_to_vmem [thread:$0]  %s3, 1024, %s258, [#allocation9], 64, 64, 4
        $region20: #{tpu_custom_call.1} parent=11 // pred_fallthru
          _
        // Predicated region
        $region21: #{tpu_custom_call.1} parent=11 // pred_check
          %p264 = pneg %p153
        $region22: #{tpu_custom_call.1} parent=11 // pred_check_branch
          %266 = sbr.rel (%p264) target = $region24
        $region23: #{tpu_custom_call.1} parent=11 // pred_region
          %s268 = ssub.s32 1024, 1024
          %269 = vsyncadd [#allocation9], %s268
          %s270 = sshll.u32 [#allocation10], 4
          %s271 = int_to_ptr.vmem [resolvable:$true] %s270
          %276 = dma.hbm_to_vmem [thread:$0]  %s4, 1024, %s271, [#allocation9], 64, 64, 4
        $region24: #{tpu_custom_call.1} parent=11 // pred_fallthru
          _
        // Predicated region
        $region25: #{tpu_custom_call.1} parent=11 // pred_check
          %p277 = pneg %p174
        $region26: #{tpu_custom_call.1} parent=11 // pred_check_branch
          %279 = sbr.rel (%p277) target = $region28
        $region27: #{tpu_custom_call.1} parent=11 // pred_region
          %s281 = ssub.s32 1024, 1024
          %282 = vsyncadd [#allocation12], %s281
          %s283 = sshll.u32 [#allocation11], 4
          %s284 = int_to_ptr.vmem [resolvable:$true] %s283
          %289 = dma.hbm_to_vmem [thread:$0]  %s5, 1024, %s284, [#allocation12], 64, 64, 4
        $region28: #{tpu_custom_call.1} parent=11 // pred_fallthru
          _
        // Predicated region
        $region29: #{tpu_custom_call.1} parent=11 // pred_check
          %p290 = pneg %p195
        $region30: #{tpu_custom_call.1} parent=11 // pred_check_branch
          %292 = sbr.rel (%p290) target = $region32
        $region31: #{tpu_custom_call.1} parent=11 // pred_region
          _
        $region32: #{tpu_custom_call.1} parent=11 // pred_fallthru
          _
      $region12: #{tpu_custom_call.1} parent=5 // pred_fallthru
        _
      %p293 = scmp.lt.s32.totalorder %s24, 2
      // Predicated region
      $region33: #{tpu_custom_call.1} parent=5 // pred_check
        %p294 = pneg %p293
      $region34: #{tpu_custom_call.1} parent=5 // pred_check_branch
        %296 = sbr.rel (%p294) target = $region36
      $region35: #{tpu_custom_call.1} parent=5 // pred_region
        // Predicated region
        $region37: #{tpu_custom_call.1} parent=35 // pred_check
          %p297 = pneg %p58
        $region38: #{tpu_custom_call.1} parent=35 // pred_check_branch
          %299 = sbr.rel (%p297) target = $region40
        $region39: #{tpu_custom_call.1} parent=35 // pred_region
          %s300 = sand.u32 %s48, 1
          %s301 = scalar_lea.sflag [#allocation3], %s300
          %s302 = sand.u32 %s48, 1
          %s303 = smul.addr %s302, 16
          %s304 = scalar_lea.vmem [#allocation2], %s303
          %s305 = smul.u32 2, %s32
          %s307 = ssub.s32 256, 256
          %308 = vsyncadd %s301, %s307
          %s309 = smul.addr %s31, 2
          %s310 = sadd.s32 %s305, %s309
          %s311 = smul.addr %s310, 128
          %s312 = scalar_lea.hbm %s0, %s311
          %s313 = sshll.u32 %s304, 4
          %s314 = int_to_ptr.vmem [resolvable:$true] %s313
          %319 = dma.hbm_to_vmem [thread:$0]  %s312, 256, %s314, %s301, 128, 128, 8
        $region40: #{tpu_custom_call.1} parent=35 // pred_fallthru
          _
        // Predicated region
        $region41: #{tpu_custom_call.1} parent=35 // pred_check
          %p320 = pneg %p84
        $region42: #{tpu_custom_call.1} parent=35 // pred_check_branch
          %322 = sbr.rel (%p320) target = $region44
        $region43: #{tpu_custom_call.1} parent=35 // pred_region
          %s323 = sand.u32 %s24, 1
          %s324 = scalar_lea.sflag [#allocation6], %s323
          %s325 = sand.u32 %s74, 1
          %s326 = smul.addr %s325, 16
          %s327 = scalar_lea.vmem [#allocation5], %s326
          %s329 = ssub.s32 256, 256
          %330 = vsyncadd %s324, %s329
          %s331 = smul.addr %s31, 2
          %s332 = smul.addr %s331, 128
          %s333 = scalar_lea.hbm %s1, %s332
          %s334 = sshll.u32 %s327, 4
          %s335 = int_to_ptr.vmem [resolvable:$true] %s334
          %340 = dma.hbm_to_vmem [thread:$0]  %s333, 256, %s335, %s324, 128, 128, 8
        $region44: #{tpu_custom_call.1} parent=35 // pred_fallthru
          _
      $region36: #{tpu_custom_call.1} parent=5 // pred_fallthru
        _
      %p341 = scmp.le.s32.totalorder 1, %s24
      %p342 = scmp.lt.s32.totalorder %s24, 3
      %p343 = pnand %p341, %p342
      %p344 = pneg %p343
      // Predicated region
      $region45: #{tpu_custom_call.1} parent=5 // pred_check
        _
      $region46: #{tpu_custom_call.1} parent=5 // pred_check_branch
        %346 = sbr.rel (%p343) target = $region48
      $region47: #{tpu_custom_call.1} parent=5 // pred_region
        %s347 = ssub.s32 %s24, 1
        %s348 = sand.u32 %s51, 1
        %s349 = scalar_lea.sflag [#allocation3], %s348
        %s350 = sand.u32 %s51, 1
        %s351 = smul.addr %s350, 16
        %s352 = scalar_lea.vmem [#allocation2], %s351
        // Predicated region
        $region49: #{tpu_custom_call.1} parent=47 // pred_check
          %p353 = pneg %p64
        $region50: #{tpu_custom_call.1} parent=47 // pred_check_branch
          %355 = sbr.rel (%p353) target = $region52
        $region51: #{tpu_custom_call.1} parent=47 // pred_region
          %356 = dma.done %s349, 256
        $region52: #{tpu_custom_call.1} parent=47 // pred_fallthru
          _
        %s357 = sand.u32 %s29, 1
        %s358 = scalar_lea.sflag [#allocation6], %s357
        %s359 = sand.u32 %s77, 1
        %s360 = smul.addr %s359, 16
        %s361 = scalar_lea.vmem [#allocation5], %s360
        // Predicated region
        $region53: #{tpu_custom_call.1} parent=47 // pred_check
          %p362 = pneg %p90
        $region54: #{tpu_custom_call.1} parent=47 // pred_check_branch
          %364 = sbr.rel (%p362) target = $region56
        $region55: #{tpu_custom_call.1} parent=47 // pred_region
          %365 = dma.done %s358, 256
        $region56: #{tpu_custom_call.1} parent=47 // pred_fallthru
          _
        // Predicated region
        $region57: #{tpu_custom_call.1} parent=47 // pred_check
          %p366 = pneg %p111
        $region58: #{tpu_custom_call.1} parent=47 // pred_check_branch
          %368 = sbr.rel (%p366) target = $region60
        $region59: #{tpu_custom_call.1} parent=47 // pred_region
          %369 = dma.done [#allocation6], 1024
        $region60: #{tpu_custom_call.1} parent=47 // pred_fallthru
          _
        // Predicated region
        $region61: #{tpu_custom_call.1} parent=47 // pred_check
          %p370 = pneg %p132
        $region62: #{tpu_custom_call.1} parent=47 // pred_check_branch
          %372 = sbr.rel (%p370) target = $region64
        $region63: #{tpu_custom_call.1} parent=47 // pred_region
          %373 = dma.done [#allocation9], 1024
        $region64: #{tpu_custom_call.1} parent=47 // pred_fallthru
          _
        // Predicated region
        $region65: #{tpu_custom_call.1} parent=47 // pred_check
          %p374 = pneg %p153
        $region66: #{tpu_custom_call.1} parent=47 // pred_check_branch
          %376 = sbr.rel (%p374) target = $region68
        $region67: #{tpu_custom_call.1} parent=47 // pred_region
          %377 = dma.done [#allocation9], 1024
        $region68: #{tpu_custom_call.1} parent=47 // pred_fallthru
          _
        // Predicated region
        $region69: #{tpu_custom_call.1} parent=47 // pred_check
          %p378 = pneg %p174
        $region70: #{tpu_custom_call.1} parent=47 // pred_check_branch
          %380 = sbr.rel (%p378) target = $region72
        $region71: #{tpu_custom_call.1} parent=47 // pred_region
          %381 = dma.done [#allocation12], 1024
        $region72: #{tpu_custom_call.1} parent=47 // pred_fallthru
          _
        %s382 = sand.u32 %s51, 1
        %s383 = scalar_lea.sflag [#allocation3], %s382
        %s384 = sand.u32 %s51, 1
        %s385 = smul.addr %s384, 16
        %s386 = scalar_lea.vmem [#allocation2], %s385
        %p387 = pneg %p64
        %p388 = pneg %p61
        %s389 = sand.u32 %s29, 1
        %s390 = scalar_lea.sflag [#allocation6], %s389
        %s391 = sand.u32 %s77, 1
        %s392 = smul.addr %s391, 16
        %s393 = scalar_lea.vmem [#allocation5], %s392
        %p394 = pneg %p90
        %p395 = pneg %p87
        %p396 = pneg %p111
        %p397 = pneg %p108
        %p398 = pneg %p132
        %p399 = pneg %p129
        %p400 = pneg %p153
        %p401 = pneg %p150
        %p402 = pneg %p174
        %p403 = pneg %p171
        %p404 = pneg %p195
        %p405 = pneg %p192
        %p406 = pneg %p223
        %p407 = pneg %p220
        %s408 = sand.u32 %s210, 1
        %s409 = scalar_lea.sflag [#allocation4], %s408
        %s410 = sand.u32 %s210, 1
        %s411 = smul.addr %s410, 16
        %s412 = scalar_lea.vmem [#allocation13], %s411
        %s413 = smul.u32 2, %s34
        %s414 = smul.u32 2, %s34
        %v416 = vld [vmem:[%s352] sm:$0xff]
        %v417 = vld [vmem:[%s352 + $0x8] sm:$0xff]
        %v418 = vpack.c.bf16 %v417, %v416
        %v419 = vld [vmem:[%s361] sm:$0xff]
        %v420 = vld [vmem:[%s361 + $0x8] sm:$0xff]
        %v421 = vpack.c.bf16 %v420, %v419
        %v422 = vld [vmem:[#allocation7] sm:$0xf]
        %v423 = vld [vmem:[#allocation7 + $0x4] sm:$0xf]
        %v424 = vld [vmem:[#allocation7 + $0x8] sm:$0xf]
        %v425 = vld [vmem:[#allocation7 + $0xc] sm:$0xf]
        %v426 = vld [vmem:[#allocation7 + $0x10] sm:$0xf]
        %v427 = vld [vmem:[#allocation7 + $0x14] sm:$0xf]
        %v428 = vld [vmem:[#allocation7 + $0x18] sm:$0xf]
        %v429 = vld [vmem:[#allocation7 + $0x1c] sm:$0xf]
        %v430 = vld [vmem:[#allocation7 + $0x20] sm:$0xf]
        %v431 = vld [vmem:[#allocation7 + $0x24] sm:$0xf]
        %v432 = vld [vmem:[#allocation7 + $0x28] sm:$0xf]
        %v433 = vld [vmem:[#allocation7 + $0x2c] sm:$0xf]
        %v434 = vld [vmem:[#allocation7 + $0x30] sm:$0xf]
        %v435 = vld [vmem:[#allocation7 + $0x34] sm:$0xf]
        %v436 = vld [vmem:[#allocation7 + $0x38] sm:$0xf]
        %v437 = vld [vmem:[#allocation7 + $0x3c] sm:$0xf]
        %v454 = vunpack.c.l.b16 %v422
        %v455 = vunpack.c.l.b16 %v423
        %v456 = vunpack.c.l.b16 %v424
        %v457 = vunpack.c.l.b16 %v425
        %v458 = vunpack.c.l.b16 %v426
        %v459 = vunpack.c.l.b16 %v427
        %v460 = vunpack.c.l.b16 %v428
        %v461 = vunpack.c.l.b16 %v429
        %v462 = vunpack.c.l.b16 %v430
        %v463 = vunpack.c.l.b16 %v431
        %v464 = vunpack.c.l.b16 %v432
        %v465 = vunpack.c.l.b16 %v433
        %v466 = vunpack.c.l.b16 %v434
        %v467 = vunpack.c.l.b16 %v435
        %v468 = vunpack.c.l.b16 %v436
        %v469 = vunpack.c.l.b16 %v437
        %v470 = vpack.c.b16 %v455, %v454
        %v471 = vpack.c.b16 %v457, %v456
        %v472 = vpack.c.b16 %v459, %v458
        %v473 = vpack.c.b16 %v461, %v460
        %v474 = vpack.c.b16 %v463, %v462
        %v475 = vpack.c.b16 %v465, %v464
        %v476 = vpack.c.b16 %v467, %v466
        %v477 = vpack.c.b16 %v469, %v468
        %486 = vmatprep.subr.bf16.mxu0 0
        %487 = vmatpush1.bf16.msra.mxu0 %v470
        %488 = vmatprep.subr.bf16.mxu0 0
        %489 = vmatpush1.bf16.msra.mxu0 %v471
        %490 = vmatprep.subr.bf16.mxu0 0
        %491 = vmatpush1.bf16.msra.mxu0 %v472
        %492 = vmatprep.subr.bf16.mxu0 0
        %493 = vmatpush1.bf16.msra.mxu0 %v473
        %494 = vmatprep.subr.bf16.mxu0 0
        %495 = vmatpush1.bf16.msra.mxu0 %v474
        %496 = vmatprep.subr.bf16.mxu0 0
        %497 = vmatpush1.bf16.msra.mxu0 %v475
        %498 = vmatprep.subr.bf16.mxu0 0
        %499 = vmatpush1.bf16.msra.mxu0 %v476
        %500 = vmatprep.subr.bf16.mxu0 0
        %501 = vmatpush1.bf16.msra.mxu0 %v477
        %502 = vmatprep.subr.bf16.mxu0 0
        %503 = vmatpush1.bf16.msra.mxu0 0
        %504 = vmatprep.subr.bf16.mxu0 0
        %505 = vmatpush1.bf16.msra.mxu0 0
        %506 = vmatprep.subr.bf16.mxu0 0
        %507 = vmatpush1.bf16.msra.mxu0 0
        %508 = vmatprep.subr.bf16.mxu0 0
        %509 = vmatpush1.bf16.msra.mxu0 0
        %510 = vmatprep.subr.bf16.mxu0 0
        %511 = vmatpush1.bf16.msra.mxu0 0
        %512 = vmatprep.subr.bf16.mxu0 0
        %513 = vmatpush1.bf16.msra.mxu0 0
        %514 = vmatprep.subr.bf16.mxu0 0
        %515 = vmatpush1.bf16.msra.mxu0 0
        %516 = vmatprep.subr.bf16.mxu0 0
        %517 = vmatpush1.bf16.msra.mxu0 0
        %518 = vmatprep.mubr.bf16.mxu0 0
        %519 = vmatmul.mubr.bf16.gmra.mrb[0].mxu0 %v418
        %v520 = vpop.f32.mrb[0].mxu0
        %v521 = vadd.f32 0.0, %v520
        %v522 = vpop.f32.mrb[0].mxu0
        %v523 = vpop.f32.mrb[0].mxu0
        %v524 = vadd.f32 0.0, %v523
        %v525 = vpop.f32.mrb[0].mxu0
        %526 = vdwg.mxu0
        %v527 = vld [vmem:[#allocation8] sm:$0xf]
        %v528 = vld [vmem:[#allocation8 + $0x4] sm:$0xf]
        %v529 = vld [vmem:[#allocation8 + $0x8] sm:$0xf]
        %v530 = vld [vmem:[#allocation8 + $0xc] sm:$0xf]
        %v531 = vld [vmem:[#allocation8 + $0x10] sm:$0xf]
        %v532 = vld [vmem:[#allocation8 + $0x14] sm:$0xf]
        %v533 = vld [vmem:[#allocation8 + $0x18] sm:$0xf]
        %v534 = vld [vmem:[#allocation8 + $0x1c] sm:$0xf]
        %v535 = vld [vmem:[#allocation8 + $0x20] sm:$0xf]
        %v536 = vld [vmem:[#allocation8 + $0x24] sm:$0xf]
        %v537 = vld [vmem:[#allocation8 + $0x28] sm:$0xf]
        %v538 = vld [vmem:[#allocation8 + $0x2c] sm:$0xf]
        %v539 = vld [vmem:[#allocation8 + $0x30] sm:$0xf]
        %v540 = vld [vmem:[#allocation8 + $0x34] sm:$0xf]
        %v541 = vld [vmem:[#allocation8 + $0x38] sm:$0xf]
        %v542 = vld [vmem:[#allocation8 + $0x3c] sm:$0xf]
        %v559 = vunpack.c.l.b16 %v527
        %v560 = vunpack.c.l.b16 %v528
        %v561 = vunpack.c.l.b16 %v529
        %v562 = vunpack.c.l.b16 %v530
        %v563 = vunpack.c.l.b16 %v531
        %v564 = vunpack.c.l.b16 %v532
        %v565 = vunpack.c.l.b16 %v533
        %v566 = vunpack.c.l.b16 %v534
        %v567 = vunpack.c.l.b16 %v535
        %v568 = vunpack.c.l.b16 %v536
        %v569 = vunpack.c.l.b16 %v537
        %v570 = vunpack.c.l.b16 %v538
        %v571 = vunpack.c.l.b16 %v539
        %v572 = vunpack.c.l.b16 %v540
        %v573 = vunpack.c.l.b16 %v541
        %v574 = vunpack.c.l.b16 %v542
        %v575 = vpack.c.b16 %v560, %v559
        %v576 = vpack.c.b16 %v562, %v561
        %v577 = vpack.c.b16 %v564, %v563
        %v578 = vpack.c.b16 %v566, %v565
        %v579 = vpack.c.b16 %v568, %v567
        %v580 = vpack.c.b16 %v570, %v569
        %v581 = vpack.c.b16 %v572, %v571
        %v582 = vpack.c.b16 %v574, %v573
        %591 = vmatprep.subr.bf16.mxu0 0
        %592 = vmatpush1.bf16.msra.mxu0 %v575
        %593 = vmatprep.subr.bf16.mxu0 0
        %594 = vmatpush1.bf16.msra.mxu0 %v576
        %595 = vmatprep.subr.bf16.mxu0 0
        %596 = vmatpush1.bf16.msra.mxu0 %v577
        %597 = vmatprep.subr.bf16.mxu0 0
        %598 = vmatpush1.bf16.msra.mxu0 %v578
        %599 = vmatprep.subr.bf16.mxu0 0
        %600 = vmatpush1.bf16.msra.mxu0 %v579
        %601 = vmatprep.subr.bf16.mxu0 0
        %602 = vmatpush1.bf16.msra.mxu0 %v580
        %603 = vmatprep.subr.bf16.mxu0 0
        %604 = vmatpush1.bf16.msra.mxu0 %v581
        %605 = vmatprep.subr.bf16.mxu0 0
        %606 = vmatpush1.bf16.msra.mxu0 %v582
        %607 = vmatprep.subr.bf16.mxu0 0
        %608 = vmatpush1.bf16.msra.mxu0 0
        %609 = vmatprep.subr.bf16.mxu0 0
        %610 = vmatpush1.bf16.msra.mxu0 0
        %611 = vmatprep.subr.bf16.mxu0 0
        %612 = vmatpush1.bf16.msra.mxu0 0
        %613 = vmatprep.subr.bf16.mxu0 0
        %614 = vmatpush1.bf16.msra.mxu0 0
        %615 = vmatprep.subr.bf16.mxu0 0
        %616 = vmatpush1.bf16.msra.mxu0 0
        %617 = vmatprep.subr.bf16.mxu0 0
        %618 = vmatpush1.bf16.msra.mxu0 0
        %619 = vmatprep.subr.bf16.mxu0 0
        %620 = vmatpush1.bf16.msra.mxu0 0
        %621 = vmatprep.subr.bf16.mxu0 0
        %622 = vmatpush1.bf16.msra.mxu0 0
        %623 = vmatprep.mubr.bf16.mxu0 0
        %624 = vmatmul.mubr.bf16.gmra.mrb[0].mxu0 %v421
        %v625 = vpop.f32.mrb[0].mxu0
        %v626 = vadd.f32 0.0, %v625
        %v627 = vpop.f32.mrb[0].mxu0
        %v628 = vpop.f32.mrb[0].mxu0
        %v629 = vadd.f32 0.0, %v628
        %v630 = vpop.f32.mrb[0].mxu0
        %631 = vdwg.mxu0
        %v632 = vld [vmem:[#allocation10] sm:$0xf]
        %v633 = vld [vmem:[#allocation10 + $0x4] sm:$0xf]
        %v634 = vld [vmem:[#allocation10 + $0x8] sm:$0xf]
        %v635 = vld [vmem:[#allocation10 + $0xc] sm:$0xf]
        %v636 = vld [vmem:[#allocation10 + $0x10] sm:$0xf]
        %v637 = vld [vmem:[#allocation10 + $0x14] sm:$0xf]
        %v638 = vld [vmem:[#allocation10 + $0x18] sm:$0xf]
        %v639 = vld [vmem:[#allocation10 + $0x1c] sm:$0xf]
        %v640 = vld [vmem:[#allocation10 + $0x20] sm:$0xf]
        %v641 = vld [vmem:[#allocation10 + $0x24] sm:$0xf]
        %v642 = vld [vmem:[#allocation10 + $0x28] sm:$0xf]
        %v643 = vld [vmem:[#allocation10 + $0x2c] sm:$0xf]
        %v644 = vld [vmem:[#allocation10 + $0x30] sm:$0xf]
        %v645 = vld [vmem:[#allocation10 + $0x34] sm:$0xf]
        %v646 = vld [vmem:[#allocation10 + $0x38] sm:$0xf]
        %v647 = vld [vmem:[#allocation10 + $0x3c] sm:$0xf]
        %v664 = vunpack.c.l.b16 %v632
        %v665 = vunpack.c.l.b16 %v633
        %v666 = vunpack.c.l.b16 %v634
        %v667 = vunpack.c.l.b16 %v635
        %v668 = vunpack.c.l.b16 %v636
        %v669 = vunpack.c.l.b16 %v637
        %v670 = vunpack.c.l.b16 %v638
        %v671 = vunpack.c.l.b16 %v639
        %v672 = vunpack.c.l.b16 %v640
        %v673 = vunpack.c.l.b16 %v641
        %v674 = vunpack.c.l.b16 %v642
        %v675 = vunpack.c.l.b16 %v643
        %v676 = vunpack.c.l.b16 %v644
        %v677 = vunpack.c.l.b16 %v645
        %v678 = vunpack.c.l.b16 %v646
        %v679 = vunpack.c.l.b16 %v647
        %v680 = vpack.c.b16 %v665, %v664
        %v681 = vpack.c.b16 %v667, %v666
        %v682 = vpack.c.b16 %v669, %v668
        %v683 = vpack.c.b16 %v671, %v670
        %v684 = vpack.c.b16 %v673, %v672
        %v685 = vpack.c.b16 %v675, %v674
        %v686 = vpack.c.b16 %v677, %v676
        %v687 = vpack.c.b16 %v679, %v678
        %696 = vmatprep.subr.bf16.mxu0 0
        %697 = vmatpush1.bf16.msra.mxu0 %v680
        %698 = vmatprep.subr.bf16.mxu0 0
        %699 = vmatpush1.bf16.msra.mxu0 %v681
        %700 = vmatprep.subr.bf16.mxu0 0
        %701 = vmatpush1.bf16.msra.mxu0 %v682
        %702 = vmatprep.subr.bf16.mxu0 0
        %703 = vmatpush1.bf16.msra.mxu0 %v683
        %704 = vmatprep.subr.bf16.mxu0 0
        %705 = vmatpush1.bf16.msra.mxu0 %v684
        %706 = vmatprep.subr.bf16.mxu0 0
        %707 = vmatpush1.bf16.msra.mxu0 %v685
        %708 = vmatprep.subr.bf16.mxu0 0
        %709 = vmatpush1.bf16.msra.mxu0 %v686
        %710 = vmatprep.subr.bf16.mxu0 0
        %711 = vmatpush1.bf16.msra.mxu0 %v687
        %712 = vmatprep.subr.bf16.mxu0 0
        %713 = vmatpush1.bf16.msra.mxu0 0
        %714 = vmatprep.subr.bf16.mxu0 0
        %715 = vmatpush1.bf16.msra.mxu0 0
        %716 = vmatprep.subr.bf16.mxu0 0
        %717 = vmatpush1.bf16.msra.mxu0 0
        %718 = vmatprep.subr.bf16.mxu0 0
        %719 = vmatpush1.bf16.msra.mxu0 0
        %720 = vmatprep.subr.bf16.mxu0 0
        %721 = vmatpush1.bf16.msra.mxu0 0
        %722 = vmatprep.subr.bf16.mxu0 0
        %723 = vmatpush1.bf16.msra.mxu0 0
        %724 = vmatprep.subr.bf16.mxu0 0
        %725 = vmatpush1.bf16.msra.mxu0 0
        %726 = vmatprep.subr.bf16.mxu0 0
        %727 = vmatpush1.bf16.msra.mxu0 0
        %728 = vmatprep.mubr.bf16.mxu0 0
        %729 = vmatmul.mubr.bf16.gmra.mrb[0].mxu0 %v421
        %v730 = vpop.f32.mrb[0].mxu0
        %v731 = vadd.f32 0.0, %v730
        %v732 = vpop.f32.mrb[0].mxu0
        %v733 = vpop.f32.mrb[0].mxu0
        %v734 = vadd.f32 0.0, %v733
        %v735 = vpop.f32.mrb[0].mxu0
        %736 = vdwg.mxu0
        %v737 = vpack.c.bf16 %v524, %v521
        %v738 = vpack.c.bf16 %v629, %v626
        %v739 = vpack.c.bf16 %v734, %v731
        %vm740 = vcmask 261120
        %v742 = vsel %vm740, %v737, 0
        %v745 = vsel %vm740, %v738, 0
        %747 = vmatprep.subr.bf16.mxu0 0
        %748 = vmatpush1.bf16.xpose.msra.mxu0 %v745
        %749 = vmatprep.subr.bf16.mxu0 0
        %750 = vmatpush1.bf16.xpose.msra.mxu0 0
        %751 = vmatprep.subr.bf16.mxu0 0
        %752 = vmatpush1.bf16.xpose.msra.mxu0 0
        %753 = vmatprep.subr.bf16.mxu0 0
        %754 = vmatpush1.bf16.xpose.msra.mxu0 0
        %755 = vmatprep.subr.bf16.mxu0 0
        %756 = vmatpush1.bf16.xpose.msra.mxu0 0
        %757 = vmatprep.subr.bf16.mxu0 0
        %758 = vmatpush1.bf16.xpose.msra.mxu0 0
        %759 = vmatprep.subr.bf16.mxu0 0
        %760 = vmatpush1.bf16.xpose.msra.mxu0 0
        %761 = vmatprep.subr.bf16.mxu0 0
        %762 = vmatpush1.bf16.xpose.msra.mxu0 0
        %763 = vmatprep.subr.bf16.mxu0 0
        %764 = vmatpush1.bf16.xpose.msra.mxu0 0
        %765 = vmatprep.subr.bf16.mxu0 0
        %766 = vmatpush1.bf16.xpose.msra.mxu0 0
        %767 = vmatprep.subr.bf16.mxu0 0
        %768 = vmatpush1.bf16.xpose.msra.mxu0 0
        %769 = vmatprep.subr.bf16.mxu0 0
        %770 = vmatpush1.bf16.xpose.msra.mxu0 0
        %771 = vmatprep.subr.bf16.mxu0 0
        %772 = vmatpush1.bf16.xpose.msra.mxu0 0
        %773 = vmatprep.subr.bf16.mxu0 0
        %774 = vmatpush1.bf16.xpose.msra.mxu0 0
        %775 = vmatprep.subr.bf16.mxu0 0
        %776 = vmatpush1.bf16.xpose.msra.mxu0 0
        %777 = vmatprep.subr.bf16.mxu0 0
        %778 = vmatpush1.bf16.xpose.msra.mxu0 0
        %779 = vmatprep.mubr.bf16.mxu0 0
        %780 = vmatmul.mubr.bf16.gmra.mrb[0].mxu0 %v742
        %v781 = vpop.f32.mrb[0].mxu0
        %v782 = vadd.f32 0.0, %v781
        %v783 = vpop.f32.mrb[0].mxu0
        %v784 = vpop.f32.mrb[0].mxu0
        %v785 = vadd.f32 0.0, %v784
        %v786 = vpop.f32.mrb[0].mxu0
        %787 = vdwg.mxu0
        %vm788 = vcmask 130048
        %v789 = vsel %vm788, %v782, -inf
        %790 = vmax.xlane.f32.xlu0 %v789
        %v791 = vpop.xlane.xlu0 %790
        %v792 = vsel %vm788, %v785, -inf
        %793 = vmax.xlane.f32.xlu0 %v792
        %v794 = vpop.xlane.xlu0 %793
        %v795 = vsub.f32 %v782, %v791
        %v796 = vsub.f32 %v785, %v794
        %v797 = vmul.f32 %v795, 1.442695
        %v798 = vpow.pop %v797
        %v799 = vmul.f32 %v796, 1.442695
        %v800 = vpow.pop %v799
        %v801 = vsel %vm788, %v798, 0.0
        %802 = vadd.xlane.f32.xlu0 %v801
        %v803 = vpop.xlane.xlu0 %802
        %v804 = vsel %vm788, %v800, 0.0
        %805 = vadd.xlane.f32.xlu0 %v804
        %v806 = vpop.xlane.xlu0 %805
        %v807 = vpack.c.bf16 %v800, %v798
        %v809 = vsel %vm788, %v807, 0
        %811 = vmatprep.subr.bf16.mxu0 0
        %812 = vmatpush1.bf16.msra.mxu0 %v739
        %813 = vmatprep.subr.bf16.mxu0 0
        %814 = vmatpush1.bf16.msra.mxu0 0
        %815 = vmatprep.subr.bf16.mxu0 0
        %816 = vmatpush1.bf16.msra.mxu0 0
        %817 = vmatprep.subr.bf16.mxu0 0
        %818 = vmatpush1.bf16.msra.mxu0 0
        %819 = vmatprep.subr.bf16.mxu0 0
        %820 = vmatpush1.bf16.msra.mxu0 0
        %821 = vmatprep.subr.bf16.mxu0 0
        %822 = vmatpush1.bf16.msra.mxu0 0
        %823 = vmatprep.subr.bf16.mxu0 0
        %824 = vmatpush1.bf16.msra.mxu0 0
        %825 = vmatprep.subr.bf16.mxu0 0
        %826 = vmatpush1.bf16.msra.mxu0 0
        %827 = vmatprep.subr.bf16.mxu0 0
        %828 = vmatpush1.bf16.msra.mxu0 0
        %829 = vmatprep.subr.bf16.mxu0 0
        %830 = vmatpush1.bf16.msra.mxu0 0
        %831 = vmatprep.subr.bf16.mxu0 0
        %832 = vmatpush1.bf16.msra.mxu0 0
        %833 = vmatprep.subr.bf16.mxu0 0
        %834 = vmatpush1.bf16.msra.mxu0 0
        %835 = vmatprep.subr.bf16.mxu0 0
        %836 = vmatpush1.bf16.msra.mxu0 0
        %837 = vmatprep.subr.bf16.mxu0 0
        %838 = vmatpush1.bf16.msra.mxu0 0
        %839 = vmatprep.subr.bf16.mxu0 0
        %840 = vmatpush1.bf16.msra.mxu0 0
        %841 = vmatprep.subr.bf16.mxu0 0
        %842 = vmatpush1.bf16.msra.mxu0 0
        %843 = vmatprep.mubr.bf16.mxu0 0
        %844 = vmatmul.mubr.bf16.gmra.mrb[0].mxu0 %v809
        %v845 = vpop.f32.mrb[0].mxu0
        %v846 = vadd.f32 0.0, %v845
        %v847 = vpop.f32.mrb[0].mxu0
        %v848 = vpop.f32.mrb[0].mxu0
        %v849 = vadd.f32 0.0, %v848
        %v850 = vpop.f32.mrb[0].mxu0
        %851 = vdwg.mxu0
        %v852 = vrcp.pop %v803
        %v853 = vrcp.pop %v806
        %v854 = vmul.f32 %v846, %v852
        %v855 = vmul.f32 %v849, %v853
        %857 = vrot.lane.b32.xlu0 %v737, 96
        %v858 = vpop.permute.xlu0 %857
        %860 = vrot.lane.b32.xlu0 %v738, 96
        %v861 = vpop.permute.xlu0 %860
        %v863 = vsel %vm740, %v858, 0
        %v866 = vsel %vm740, %v861, 0
        %868 = vmatprep.subr.bf16.mxu0 0
        %869 = vmatpush1.bf16.xpose.msra.mxu0 %v866
        %870 = vmatprep.subr.bf16.mxu0 0
        %871 = vmatpush1.bf16.xpose.msra.mxu0 0
        %872 = vmatprep.subr.bf16.mxu0 0
        %873 = vmatpush1.bf16.xpose.msra.mxu0 0
        %874 = vmatprep.subr.bf16.mxu0 0
        %875 = vmatpush1.bf16.xpose.msra.mxu0 0
        %876 = vmatprep.subr.bf16.mxu0 0
        %877 = vmatpush1.bf16.xpose.msra.mxu0 0
        %878 = vmatprep.subr.bf16.mxu0 0
        %879 = vmatpush1.bf16.xpose.msra.mxu0 0
        %880 = vmatprep.subr.bf16.mxu0 0
        %881 = vmatpush1.bf16.xpose.msra.mxu0 0
        %882 = vmatprep.subr.bf16.mxu0 0
        %883 = vmatpush1.bf16.xpose.msra.mxu0 0
        %884 = vmatprep.subr.bf16.mxu0 0
        %885 = vmatpush1.bf16.xpose.msra.mxu0 0
        %886 = vmatprep.subr.bf16.mxu0 0
        %887 = vmatpush1.bf16.xpose.msra.mxu0 0
        %888 = vmatprep.subr.bf16.mxu0 0
        %889 = vmatpush1.bf16.xpose.msra.mxu0 0
        %890 = vmatprep.subr.bf16.mxu0 0
        %891 = vmatpush1.bf16.xpose.msra.mxu0 0
        %892 = vmatprep.subr.bf16.mxu0 0
        %893 = vmatpush1.bf16.xpose.msra.mxu0 0
        %894 = vmatprep.subr.bf16.mxu0 0
        %895 = vmatpush1.bf16.xpose.msra.mxu0 0
        %896 = vmatprep.subr.bf16.mxu0 0
        %897 = vmatpush1.bf16.xpose.msra.mxu0 0
        %898 = vmatprep.subr.bf16.mxu0 0
        %899 = vmatpush1.bf16.xpose.msra.mxu0 0
        %900 = vmatprep.mubr.bf16.mxu0 0
        %901 = vmatmul.mubr.bf16.gmra.mrb[0].mxu0 %v863
        %v902 = vpop.f32.mrb[0].mxu0
        %v903 = vadd.f32 0.0, %v902
        %v904 = vpop.f32.mrb[0].mxu0
        %v905 = vpop.f32.mrb[0].mxu0
        %v906 = vadd.f32 0.0, %v905
        %v907 = vpop.f32.mrb[0].mxu0
        %908 = vdwg.mxu0
        %v909 = vsel %vm788, %v903, -inf
        %910 = vmax.xlane.f32.xlu0 %v909
        %v911 = vpop.xlane.xlu0 %910
        %v912 = vsel %vm788, %v906, -inf
        %913 = vmax.xlane.f32.xlu0 %v912
        %v914 = vpop.xlane.xlu0 %913
        %v915 = vsub.f32 %v903, %v911
        %v916 = vsub.f32 %v906, %v914
        %v917 = vmul.f32 %v915, 1.442695
        %v918 = vpow.pop %v917
        %v919 = vmul.f32 %v916, 1.442695
        %v920 = vpow.pop %v919
        %v921 = vsel %vm788, %v918, 0.0
        %922 = vadd.xlane.f32.xlu0 %v921
        %v923 = vpop.xlane.xlu0 %922
        %v924 = vsel %vm788, %v920, 0.0
        %925 = vadd.xlane.f32.xlu0 %v924
        %v926 = vpop.xlane.xlu0 %925
        %v927 = vpack.c.bf16 %v920, %v918
        %929 = vrot.lane.b32.xlu0 %v739, 96
        %v930 = vpop.permute.xlu0 %929
        %v933 = vsel %vm788, %v927, 0
        %935 = vmatprep.subr.bf16.mxu0 0
        %936 = vmatpush1.bf16.msra.mxu0 %v930
        %937 = vmatprep.subr.bf16.mxu0 0
        %938 = vmatpush1.bf16.msra.mxu0 0
        %939 = vmatprep.subr.bf16.mxu0 0
        %940 = vmatpush1.bf16.msra.mxu0 0
        %941 = vmatprep.subr.bf16.mxu0 0
        %942 = vmatpush1.bf16.msra.mxu0 0
        %943 = vmatprep.subr.bf16.mxu0 0
        %944 = vmatpush1.bf16.msra.mxu0 0
        %945 = vmatprep.subr.bf16.mxu0 0
        %946 = vmatpush1.bf16.msra.mxu0 0
        %947 = vmatprep.subr.bf16.mxu0 0
        %948 = vmatpush1.bf16.msra.mxu0 0
        %949 = vmatprep.subr.bf16.mxu0 0
        %950 = vmatpush1.bf16.msra.mxu0 0
        %951 = vmatprep.subr.bf16.mxu0 0
        %952 = vmatpush1.bf16.msra.mxu0 0
        %953 = vmatprep.subr.bf16.mxu0 0
        %954 = vmatpush1.bf16.msra.mxu0 0
        %955 = vmatprep.subr.bf16.mxu0 0
        %956 = vmatpush1.bf16.msra.mxu0 0
        %957 = vmatprep.subr.bf16.mxu0 0
        %958 = vmatpush1.bf16.msra.mxu0 0
        %959 = vmatprep.subr.bf16.mxu0 0
        %960 = vmatpush1.bf16.msra.mxu0 0
        %961 = vmatprep.subr.bf16.mxu0 0
        %962 = vmatpush1.bf16.msra.mxu0 0
        %963 = vmatprep.subr.bf16.mxu0 0
        %964 = vmatpush1.bf16.msra.mxu0 0
        %965 = vmatprep.subr.bf16.mxu0 0
        %966 = vmatpush1.bf16.msra.mxu0 0
        %967 = vmatprep.mubr.bf16.mxu0 0
        %968 = vmatmul.mubr.bf16.gmra.mrb[0].mxu0 %v933
        %v969 = vpop.f32.mrb[0].mxu0
        %v970 = vadd.f32 0.0, %v969
        %v971 = vpop.f32.mrb[0].mxu0
        %v972 = vpop.f32.mrb[0].mxu0
        %v973 = vadd.f32 0.0, %v972
        %v974 = vpop.f32.mrb[0].mxu0
        %975 = vdwg.mxu0
        %v976 = vrcp.pop %v923
        %v977 = vrcp.pop %v926
        %v978 = vmul.f32 %v970, %v976
        %v979 = vmul.f32 %v973, %v977
        %980 = vrot.lane.b32.xlu0 %v737, 64
        %v981 = vpop.permute.xlu0 %980
        %982 = vrot.lane.b32.xlu0 %v738, 64
        %v983 = vpop.permute.xlu0 %982
        %v985 = vsel %vm740, %v981, 0
        %v988 = vsel %vm740, %v983, 0
        %990 = vmatprep.subr.bf16.mxu0 0
        %991 = vmatpush1.bf16.xpose.msra.mxu0 %v988
        %992 = vmatprep.subr.bf16.mxu0 0
        %993 = vmatpush1.bf16.xpose.msra.mxu0 0
        %994 = vmatprep.subr.bf16.mxu0 0
        %995 = vmatpush1.bf16.xpose.msra.mxu0 0
        %996 = vmatprep.subr.bf16.mxu0 0
        %997 = vmatpush1.bf16.xpose.msra.mxu0 0
        %998 = vmatprep.subr.bf16.mxu0 0
        %999 = vmatpush1.bf16.xpose.msra.mxu0 0
        %1000 = vmatprep.subr.bf16.mxu0 0
        %1001 = vmatpush1.bf16.xpose.msra.mxu0 0
        %1002 = vmatprep.subr.bf16.mxu0 0
        %1003 = vmatpush1.bf16.xpose.msra.mxu0 0
        %1004 = vmatprep.subr.bf16.mxu0 0
        %1005 = vmatpush1.bf16.xpose.msra.mxu0 0
        %1006 = vmatprep.subr.bf16.mxu0 0
        %1007 = vmatpush1.bf16.xpose.msra.mxu0 0
        %1008 = vmatprep.subr.bf16.mxu0 0
        %1009 = vmatpush1.bf16.xpose.msra.mxu0 0
        %1010 = vmatprep.subr.bf16.mxu0 0
        %1011 = vmatpush1.bf16.xpose.msra.mxu0 0
        %1012 = vmatprep.subr.bf16.mxu0 0
        %1013 = vmatpush1.bf16.xpose.msra.mxu0 0
        %1014 = vmatprep.subr.bf16.mxu0 0
        %1015 = vmatpush1.bf16.xpose.msra.mxu0 0
        %1016 = vmatprep.subr.bf16.mxu0 0
        %1017 = vmatpush1.bf16.xpose.msra.mxu0 0
        %1018 = vmatprep.subr.bf16.mxu0 0
        %1019 = vmatpush1.bf16.xpose.msra.mxu0 0
        %1020 = vmatprep.subr.bf16.mxu0 0
        %1021 = vmatpush1.bf16.xpose.msra.mxu0 0
        %1022 = vmatprep.mubr.bf16.mxu0 0
        %1023 = vmatmul.mubr.bf16.gmra.mrb[0].mxu0 %v985
        %v1024 = vpop.f32.mrb[0].mxu0
        %v1025 = vadd.f32 0.0, %v1024
        %v1026 = vpop.f32.mrb[0].mxu0
        %v1027 = vpop.f32.mrb[0].mxu0
        %v1028 = vadd.f32 0.0, %v1027
        %v1029 = vpop.f32.mrb[0].mxu0
        %1030 = vdwg.mxu0
        %v1031 = vsel %vm788, %v1025, -inf
        %1032 = vmax.xlane.f32.xlu0 %v1031
        %v1033 = vpop.xlane.xlu0 %1032
        %v1034 = vsel %vm788, %v1028, -inf
        %1035 = vmax.xlane.f32.xlu0 %v1034
        %v1036 = vpop.xlane.xlu0 %1035
        %v1037 = vsub.f32 %v1025, %v1033
        %v1038 = vsub.f32 %v1028, %v1036
        %v1039 = vmul.f32 %v1037, 1.442695
        %v1040 = vpow.pop %v1039
        %v1041 = vmul.f32 %v1038, 1.442695
        %v1042 = vpow.pop %v1041
        %v1043 = vsel %vm788, %v1040, 0.0
        %1044 = vadd.xlane.f32.xlu0 %v1043
        %v1045 = vpop.xlane.xlu0 %1044
        %v1046 = vsel %vm788, %v1042, 0.0
        %1047 = vadd.xlane.f32.xlu0 %v1046
        %v1048 = vpop.xlane.xlu0 %1047
        %v1049 = vpack.c.bf16 %v1042, %v1040
        %1050 = vrot.lane.b32.xlu0 %v739, 64
        %v1051 = vpop.permute.xlu0 %1050
        %v1054 = vsel %vm788, %v1049, 0
        %1056 = vmatprep.subr.bf16.mxu0 0
        %1057 = vmatpush1.bf16.msra.mxu0 %v1051
        %1058 = vmatprep.subr.bf16.mxu0 0
        %1059 = vmatpush1.bf16.msra.mxu0 0
        %1060 = vmatprep.subr.bf16.mxu0 0
        %1061 = vmatpush1.bf16.msra.mxu0 0
        %1062 = vmatprep.subr.bf16.mxu0 0
        %1063 = vmatpush1.bf16.msra.mxu0 0
        %1064 = vmatprep.subr.bf16.mxu0 0
        %1065 = vmatpush1.bf16.msra.mxu0 0
        %1066 = vmatprep.subr.bf16.mxu0 0
        %1067 = vmatpush1.bf16.msra.mxu0 0
        %1068 = vmatprep.subr.bf16.mxu0 0
        %1069 = vmatpush1.bf16.msra.mxu0 0
        %1070 = vmatprep.subr.bf16.mxu0 0
        %1071 = vmatpush1.bf16.msra.mxu0 0
        %1072 = vmatprep.subr.bf16.mxu0 0
        %1073 = vmatpush1.bf16.msra.mxu0 0
        %1074 = vmatprep.subr.bf16.mxu0 0
        %1075 = vmatpush1.bf16.msra.mxu0 0
        %1076 = vmatprep.subr.bf16.mxu0 0
        %1077 = vmatpush1.bf16.msra.mxu0 0
        %1078 = vmatprep.subr.bf16.mxu0 0
        %1079 = vmatpush1.bf16.msra.mxu0 0
        %1080 = vmatprep.subr.bf16.mxu0 0
        %1081 = vmatpush1.bf16.msra.mxu0 0
        %1082 = vmatprep.subr.bf16.mxu0 0
        %1083 = vmatpush1.bf16.msra.mxu0 0
        %1084 = vmatprep.subr.bf16.mxu0 0
        %1085 = vmatpush1.bf16.msra.mxu0 0
        %1086 = vmatprep.subr.bf16.mxu0 0
        %1087 = vmatpush1.bf16.msra.mxu0 0
        %1088 = vmatprep.mubr.bf16.mxu0 0
        %1089 = vmatmul.mubr.bf16.gmra.mrb[0].mxu0 %v1054
        %v1090 = vpop.f32.mrb[0].mxu0
        %v1091 = vadd.f32 0.0, %v1090
        %v1092 = vpop.f32.mrb[0].mxu0
        %v1093 = vpop.f32.mrb[0].mxu0
        %v1094 = vadd.f32 0.0, %v1093
        %v1095 = vpop.f32.mrb[0].mxu0
        %1096 = vdwg.mxu0
        %v1097 = vrcp.pop %v1045
        %v1098 = vrcp.pop %v1048
        %v1099 = vmul.f32 %v1091, %v1097
        %v1100 = vmul.f32 %v1094, %v1098
        %1101 = vrot.lane.b32.xlu0 %v737, 32
        %v1102 = vpop.permute.xlu0 %1101
        %1103 = vrot.lane.b32.xlu0 %v738, 32
        %v1104 = vpop.permute.xlu0 %1103
        %v1106 = vsel %vm740, %v1102, 0
        %v1109 = vsel %vm740, %v1104, 0
        %1111 = vmatprep.subr.bf16.mxu0 0
        %1112 = vmatpush1.bf16.xpose.msra.mxu0 %v1109
        %1113 = vmatprep.subr.bf16.mxu0 0
        %1114 = vmatpush1.bf16.xpose.msra.mxu0 0
        %1115 = vmatprep.subr.bf16.mxu0 0
        %1116 = vmatpush1.bf16.xpose.msra.mxu0 0
        %1117 = vmatprep.subr.bf16.mxu0 0
        %1118 = vmatpush1.bf16.xpose.msra.mxu0 0
        %1119 = vmatprep.subr.bf16.mxu0 0
        %1120 = vmatpush1.bf16.xpose.msra.mxu0 0
        %1121 = vmatprep.subr.bf16.mxu0 0
        %1122 = vmatpush1.bf16.xpose.msra.mxu0 0
        %1123 = vmatprep.subr.bf16.mxu0 0
        %1124 = vmatpush1.bf16.xpose.msra.mxu0 0
        %1125 = vmatprep.subr.bf16.mxu0 0
        %1126 = vmatpush1.bf16.xpose.msra.mxu0 0
        %1127 = vmatprep.subr.bf16.mxu0 0
        %1128 = vmatpush1.bf16.xpose.msra.mxu0 0
        %1129 = vmatprep.subr.bf16.mxu0 0
        %1130 = vmatpush1.bf16.xpose.msra.mxu0 0
        %1131 = vmatprep.subr.bf16.mxu0 0
        %1132 = vmatpush1.bf16.xpose.msra.mxu0 0
        %1133 = vmatprep.subr.bf16.mxu0 0
        %1134 = vmatpush1.bf16.xpose.msra.mxu0 0
        %1135 = vmatprep.subr.bf16.mxu0 0
        %1136 = vmatpush1.bf16.xpose.msra.mxu0 0
        %1137 = vmatprep.subr.bf16.mxu0 0
        %1138 = vmatpush1.bf16.xpose.msra.mxu0 0
        %1139 = vmatprep.subr.bf16.mxu0 0
        %1140 = vmatpush1.bf16.xpose.msra.mxu0 0
        %1141 = vmatprep.subr.bf16.mxu0 0
        %1142 = vmatpush1.bf16.xpose.msra.mxu0 0
        %1143 = vmatprep.mubr.bf16.mxu0 0
        %1144 = vmatmul.mubr.bf16.gmra.mrb[0].mxu0 %v1106
        %v1145 = vpop.f32.mrb[0].mxu0
        %v1146 = vadd.f32 0.0, %v1145
        %v1147 = vpop.f32.mrb[0].mxu0
        %v1148 = vpop.f32.mrb[0].mxu0
        %v1149 = vadd.f32 0.0, %v1148
        %v1150 = vpop.f32.mrb[0].mxu0
        %1151 = vdwg.mxu0
        %v1152 = vsel %vm788, %v1146, -inf
        %1153 = vmax.xlane.f32.xlu0 %v1152
        %v1154 = vpop.xlane.xlu0 %1153
        %v1155 = vsel %vm788, %v1149, -inf
        %1156 = vmax.xlane.f32.xlu0 %v1155
        %v1157 = vpop.xlane.xlu0 %1156
        %v1158 = vsub.f32 %v1146, %v1154
        %v1159 = vsub.f32 %v1149, %v1157
        %v1160 = vmul.f32 %v1158, 1.442695
        %v1161 = vpow.pop %v1160
        %v1162 = vmul.f32 %v1159, 1.442695
        %v1163 = vpow.pop %v1162
        %v1164 = vsel %vm788, %v1161, 0.0
        %1165 = vadd.xlane.f32.xlu0 %v1164
        %v1166 = vpop.xlane.xlu0 %1165
        %v1167 = vsel %vm788, %v1163, 0.0
        %1168 = vadd.xlane.f32.xlu0 %v1167
        %v1169 = vpop.xlane.xlu0 %1168
        %v1170 = vpack.c.bf16 %v1163, %v1161
        %1171 = vrot.lane.b32.xlu0 %v739, 32
        %v1172 = vpop.permute.xlu0 %1171
        %v1175 = vsel %vm788, %v1170, 0
        %1177 = vmatprep.subr.bf16.mxu0 0
        %1178 = vmatpush1.bf16.msra.mxu0 %v1172
        %1179 = vmatprep.subr.bf16.mxu0 0
        %1180 = vmatpush1.bf16.msra.mxu0 0
        %1181 = vmatprep.subr.bf16.mxu0 0
        %1182 = vmatpush1.bf16.msra.mxu0 0
        %1183 = vmatprep.subr.bf16.mxu0 0
        %1184 = vmatpush1.bf16.msra.mxu0 0
        %1185 = vmatprep.subr.bf16.mxu0 0
        %1186 = vmatpush1.bf16.msra.mxu0 0
        %1187 = vmatprep.subr.bf16.mxu0 0
        %1188 = vmatpush1.bf16.msra.mxu0 0
        %1189 = vmatprep.subr.bf16.mxu0 0
        %1190 = vmatpush1.bf16.msra.mxu0 0
        %1191 = vmatprep.subr.bf16.mxu0 0
        %1192 = vmatpush1.bf16.msra.mxu0 0
        %1193 = vmatprep.subr.bf16.mxu0 0
        %1194 = vmatpush1.bf16.msra.mxu0 0
        %1195 = vmatprep.subr.bf16.mxu0 0
        %1196 = vmatpush1.bf16.msra.mxu0 0
        %1197 = vmatprep.subr.bf16.mxu0 0
        %1198 = vmatpush1.bf16.msra.mxu0 0
        %1199 = vmatprep.subr.bf16.mxu0 0
        %1200 = vmatpush1.bf16.msra.mxu0 0
        %1201 = vmatprep.subr.bf16.mxu0 0
        %1202 = vmatpush1.bf16.msra.mxu0 0
        %1203 = vmatprep.subr.bf16.mxu0 0
        %1204 = vmatpush1.bf16.msra.mxu0 0
        %1205 = vmatprep.subr.bf16.mxu0 0
        %1206 = vmatpush1.bf16.msra.mxu0 0
        %1207 = vmatprep.subr.bf16.mxu0 0
        %1208 = vmatpush1.bf16.msra.mxu0 0
        %1209 = vmatprep.mubr.bf16.mxu0 0
        %1210 = vmatmul.mubr.bf16.gmra.mrb[0].mxu0 %v1175
        %v1211 = vpop.f32.mrb[0].mxu0
        %v1212 = vadd.f32 0.0, %v1211
        %v1213 = vpop.f32.mrb[0].mxu0
        %v1214 = vpop.f32.mrb[0].mxu0
        %v1215 = vadd.f32 0.0, %v1214
        %v1216 = vpop.f32.mrb[0].mxu0
        %1217 = vdwg.mxu0
        %v1218 = vrcp.pop %v1166
        %v1219 = vrcp.pop %v1169
        %v1220 = vmul.f32 %v1212, %v1218
        %v1221 = vmul.f32 %v1215, %v1219
        %1224 = vrot.lane.b32.xlu0 %v978, 32
        %v1225 = vpop.permute.xlu0 %1224
        %1226 = vrot.lane.b32.xlu0 %v979, 32
        %v1227 = vpop.permute.xlu0 %1226
        %1232 = vrot.lane.b32.xlu0 %v1099, 64
        %v1233 = vpop.permute.xlu0 %1232
        %1234 = vrot.lane.b32.xlu0 %v1100, 64
        %v1235 = vpop.permute.xlu0 %1234
        %1240 = vrot.lane.b32.xlu0 %v1220, 96
        %v1241 = vpop.permute.xlu0 %1240
        %1242 = vrot.lane.b32.xlu0 %v1221, 96
        %v1243 = vpop.permute.xlu0 %1242
        %v1246 = vsel %vm740, %v854, %v1225
        %v1247 = vsel %vm740, %v855, %v1227
        %vm1248 = vcmask 523264
        %v1249 = vsel %vm1248, %v1246, %v1233
        %v1250 = vsel %vm1248, %v1247, %v1235
        %vm1251 = vcmask 785408
        %v1252 = vsel %vm1251, %v1249, %v1241
        %v1253 = vsel %vm1251, %v1250, %v1243
        %v1254 = vpack.c.bf16 %v1253, %v1252
        %v1255 = vld [vmem:[#allocation11] sm:$0xf]
        %v1256 = vld [vmem:[#allocation11 + $0x4] sm:$0xf]
        %v1257 = vld [vmem:[#allocation11 + $0x8] sm:$0xf]
        %v1258 = vld [vmem:[#allocation11 + $0xc] sm:$0xf]
        %v1259 = vld [vmem:[#allocation11 + $0x10] sm:$0xf]
        %v1260 = vld [vmem:[#allocation11 + $0x14] sm:$0xf]
        %v1261 = vld [vmem:[#allocation11 + $0x18] sm:$0xf]
        %v1262 = vld [vmem:[#allocation11 + $0x1c] sm:$0xf]
        %v1263 = vld [vmem:[#allocation11 + $0x20] sm:$0xf]
        %v1264 = vld [vmem:[#allocation11 + $0x24] sm:$0xf]
        %v1265 = vld [vmem:[#allocation11 + $0x28] sm:$0xf]
        %v1266 = vld [vmem:[#allocation11 + $0x2c] sm:$0xf]
        %v1267 = vld [vmem:[#allocation11 + $0x30] sm:$0xf]
        %v1268 = vld [vmem:[#allocation11 + $0x34] sm:$0xf]
        %v1269 = vld [vmem:[#allocation11 + $0x38] sm:$0xf]
        %v1270 = vld [vmem:[#allocation11 + $0x3c] sm:$0xf]
        %v1271 = vld [vmem:[%s6] sm:$0x1]
        %v1273 = vlaneseq
        %v1274 = vshrl.u32 %v1273, 7
        %v1275 = vsub.s32 0, %v1274
        %v1276 = vrot.slane %v1271, %v1275
        %v1294 = vunpack.c.l.b16 %v1255
        %v1295 = vunpack.c.l.b16 %v1256
        %v1296 = vunpack.c.l.b16 %v1257
        %v1297 = vunpack.c.l.b16 %v1258
        %v1298 = vunpack.c.l.b16 %v1259
        %v1299 = vunpack.c.l.b16 %v1260
        %v1300 = vunpack.c.l.b16 %v1261
        %v1301 = vunpack.c.l.b16 %v1262
        %v1302 = vunpack.c.l.b16 %v1263
        %v1303 = vunpack.c.l.b16 %v1264
        %v1304 = vunpack.c.l.b16 %v1265
        %v1305 = vunpack.c.l.b16 %v1266
        %v1306 = vunpack.c.l.b16 %v1267
        %v1307 = vunpack.c.l.b16 %v1268
        %v1308 = vunpack.c.l.b16 %v1269
        %v1309 = vunpack.c.l.b16 %v1270
        %v1310 = vpack.c.b16 %v1295, %v1294
        %v1311 = vpack.c.b16 %v1297, %v1296
        %v1312 = vpack.c.b16 %v1299, %v1298
        %v1313 = vpack.c.b16 %v1301, %v1300
        %v1314 = vpack.c.b16 %v1303, %v1302
        %v1315 = vpack.c.b16 %v1305, %v1304
        %v1316 = vpack.c.b16 %v1307, %v1306
        %v1317 = vpack.c.b16 %v1309, %v1308
        %1326 = vmatprep.subr.bf16.mxu0 0
        %1327 = vmatpush1.bf16.msra.mxu0 %v1310
        %1328 = vmatprep.subr.bf16.mxu0 0
        %1329 = vmatpush1.bf16.msra.mxu0 %v1311
        %1330 = vmatprep.subr.bf16.mxu0 0
        %1331 = vmatpush1.bf16.msra.mxu0 %v1312
        %1332 = vmatprep.subr.bf16.mxu0 0
        %1333 = vmatpush1.bf16.msra.mxu0 %v1313
        %1334 = vmatprep.subr.bf16.mxu0 0
        %1335 = vmatpush1.bf16.msra.mxu0 %v1314
        %1336 = vmatprep.subr.bf16.mxu0 0
        %1337 = vmatpush1.bf16.msra.mxu0 %v1315
        %1338 = vmatprep.subr.bf16.mxu0 0
        %1339 = vmatpush1.bf16.msra.mxu0 %v1316
        %1340 = vmatprep.subr.bf16.mxu0 0
        %1341 = vmatpush1.bf16.msra.mxu0 %v1317
        %1342 = vmatprep.subr.bf16.mxu0 0
        %1343 = vmatpush1.bf16.msra.mxu0 0
        %1344 = vmatprep.subr.bf16.mxu0 0
        %1345 = vmatpush1.bf16.msra.mxu0 0
        %1346 = vmatprep.subr.bf16.mxu0 0
        %1347 = vmatpush1.bf16.msra.mxu0 0
        %1348 = vmatprep.subr.bf16.mxu0 0
        %1349 = vmatpush1.bf16.msra.mxu0 0
        %1350 = vmatprep.subr.bf16.mxu0 0
        %1351 = vmatpush1.bf16.msra.mxu0 0
        %1352 = vmatprep.subr.bf16.mxu0 0
        %1353 = vmatpush1.bf16.msra.mxu0 0
        %1354 = vmatprep.subr.bf16.mxu0 0
        %1355 = vmatpush1.bf16.msra.mxu0 0
        %1356 = vmatprep.subr.bf16.mxu0 0
        %1357 = vmatpush1.bf16.msra.mxu0 0
        %1358 = vmatprep.mubr.bf16.mxu0 0
        %1359 = vmatmul.mubr.bf16.gmra.mrb[0].mxu0 %v1254
        %v1360 = vpop.f32.mrb[0].mxu0
        %v1361 = vadd.f32 %v1276, %v1360
        %v1362 = vpop.f32.mrb[0].mxu0
        %v1363 = vpop.f32.mrb[0].mxu0
        %v1364 = vadd.f32 %v1276, %v1363
        %v1365 = vpop.f32.mrb[0].mxu0
        %1366 = vdwg.mxu0
        %1367 = vst [vmem:[%s412] sm:$0xff] %v1361
        %1368 = vst [vmem:[%s412 + $0x8] sm:$0xff] %v1364
        %s1369 = sand.u32 %s210, 1
        %s1370 = scalar_lea.sflag [#allocation4], %s1369
        %s1371 = sand.u32 %s210, 1
        %s1372 = smul.addr %s1371, 16
        %s1373 = scalar_lea.vmem [#allocation13], %s1372
        // Predicated region
        $region73: #{tpu_custom_call.1} parent=47 // pred_check
          %p1374 = pneg %p220
        $region74: #{tpu_custom_call.1} parent=47 // pred_check_branch
          %1376 = sbr.rel (%p1374) target = $region76
        $region75: #{tpu_custom_call.1} parent=47 // pred_region
          %s1377 = smul.u32 2, %s34
          %s1379 = ssub.s32 256, 256
          %1380 = vsyncadd %s1370, %s1379
          %s1381 = smul.addr %s33, 2
          %s1382 = sadd.s32 %s1377, %s1381
          %s1383 = smul.addr %s1382, 128
          %s1384 = scalar_lea.hbm %s7, %s1383
          %s1385 = sshll.u32 %s1373, 4
          %s1386 = int_to_ptr.vmem [resolvable:$true] %s1385
          %1391 = dma.vmem_to_hbm [thread:$0]  %s1386, 256, %s1384, %s1370, 128, 128, 8
        $region76: #{tpu_custom_call.1} parent=47 // pred_fallthru
          _
      $region48: #{tpu_custom_call.1} parent=5 // pred_fallthru
        _
      %p1392 = scmp.le.s32.totalorder 2, %s24
      // Predicated region
      $region77: #{tpu_custom_call.1} parent=5 // pred_check
        %p1393 = pneg %p1392
      $region78: #{tpu_custom_call.1} parent=5 // pred_check_branch
        %1395 = sbr.rel (%p1393) target = $region80
      $region79: #{tpu_custom_call.1} parent=5 // pred_region
        %s1396 = ssub.s32 %s24, 2
        // Predicated region
        $region81: #{tpu_custom_call.1} parent=79 // pred_check
          %p1397 = pneg %p226
        $region82: #{tpu_custom_call.1} parent=79 // pred_check_branch
          %1399 = sbr.rel (%p1397) target = $region84
        $region83: #{tpu_custom_call.1} parent=79 // pred_region
          %s1400 = sand.u32 %s211, 1
          %s1401 = scalar_lea.sflag [#allocation4], %s1400
          %s1402 = sand.u32 %s211, 1
          %s1403 = smul.addr %s1402, 16
          %s1404 = scalar_lea.vmem [#allocation13], %s1403
          %1405 = dma.done %s1401, 256
        $region84: #{tpu_custom_call.1} parent=79 // pred_fallthru
          _
      $region80: #{tpu_custom_call.1} parent=5 // pred_fallthru
        _
    $region6: #{tpu_custom_call.1} parent=1 // loop_footer
      %s28 = sadd.s32 1, %s24
    $region7: #{tpu_custom_call.1} parent=1 // loop_footer_branch
      %23 = sbr.rel target = $region3
    $region8: #{tpu_custom_call.1} parent=1 // loop_exit
      _
    %1406 = vsyncpa [#allocation3], 1
    %s1407 = scalar_lea.sflag [#allocation3], 1
    %1408 = vsyncpa %s1407, 1
    %1409 = vsyncpa [#allocation6], 1
    %s1410 = scalar_lea.sflag [#allocation6], 1
    %1411 = vsyncpa %s1410, 1
    %1412 = vsyncpa [#allocation9], 1
    %1413 = vsyncpa [#allocation12], 1
    %1414 = vsyncpa [#allocation4], 1
    %s1415 = scalar_lea.sflag [#allocation4], 1
    %1416 = vsyncpa %s1415, 1

</llo_original>
